<compile_context>
chip_gen: v5e
topology: v5e:2x2
jax: 0.10.0
libtpu: 0.0.40
codegen_flags: <defaults>
</compile_context>

<pallas_src>
import functools

import jax
import jax.numpy as jnp
from jax import lax
from jax.experimental import pallas as pl
from jax.experimental.pallas import tpu as pltpu

SCALE = 0.5 ** 0.5  # torch.sqrt(FloatTensor([0.5]))


def _round_up(x, m=128):
    return ((x + m - 1) // m) * m


def _pad_lanes(x, width):
    pad = width - x.shape[-1]
    if pad == 0:
        return x
    return jnp.concatenate(
        [x, jnp.zeros(x.shape[:-1] + (pad,), x.dtype)], axis=-1)


# --------------------------------------------------------------------------
# Pallas kernel: one grid step == one batch element
# --------------------------------------------------------------------------
def _decoder_kernel(src_ref, trg_ref, ect_ref, ee_ref, pe_ref, pp_ref,
                    w1_ref, b1_ref, w2_ref, b2_ref, w3_ref, b3_ref,
                    w4_ref, b4_ref, cwa_ref, cwg_ref, cba_ref, cbg_ref,
                    out_ref, attn_ref, *, kernel_size):
    f32 = jnp.float32
    bf16 = jnp.bfloat16
    K = kernel_size

    src = src_ref[0]                 # [S, E]
    trg = trg_ref[0]                 # [T, E]
    enc_conved_t = ect_ref[0]        # [E, S]  (pre-transposed in the wrapper)
    enc_embed = ee_ref[0]            # [S, E]
    pos = pe_ref[...]                # [T, E]
    pad_proj = pp_ref[...]           # [1, H]  tanh(emb2hid(pad_vector))

    T, E = trg.shape
    S = src.shape[0]
    H = pad_proj.shape[1]
    L = cwa_ref.shape[0]

    def mm_bf16(x, w):               # bf16 MXU operands, f32 accumulation
        return jnp.dot(x.astype(bf16), w, preferred_element_type=f32)

    def mm_f32(x, y):                # attention path kept in f32
        return jnp.dot(x, y, preferred_element_type=f32)

    def approx_sigmoid(x):           # EUP exp + approx reciprocal (no VALU divide)
        return pl.reciprocal(1.0 + jnp.exp(-x), approx=True)

    def softmax_last(x):
        m = jnp.max(x, axis=-1, keepdims=True)
        e = jnp.exp(x - m)
        return e * pl.reciprocal(jnp.sum(e, axis=-1, keepdims=True), approx=True)

    # ---- loop-invariant constants (hoisted out of the layer/tap loops) ----
    ti = lax.broadcasted_iota(jnp.int32, (T, S), 0)
    sj = lax.broadcasted_iota(jnp.int32, (T, S), 1)
    interior_mask = (ti >= 1) & (sj >= 1)
    corner_mask = (ti == 0) & (sj == 0)
    zrow = jnp.zeros((1, S), f32)
    zcol = jnp.zeros((T, 1), f32)
    pad_rows = {d: jnp.broadcast_to(pad_proj, (d, H)) for d in range(1, K)}

    def faster_forward(att):         # att: [T, S]
        # cumm[t,s] = att[t,s]*(att[t-1,s-1]+att[t-1,s]+att[t,s-1]) for t,s>=1,
        # cumm[0,0] = att[0,0], rest of row 0 / col 0 stays zero; softmax over s.
        p = jnp.concatenate([zrow, att[:-1, :]], axis=0)        # att[t-1, s]
        q = jnp.concatenate([zcol, (att + p)[:, :-1]], axis=1)  # att[t,s-1]+att[t-1,s-1]
        cumm = jnp.where(interior_mask, att * (p + q), 0.0)
        cumm = jnp.where(corner_mask, att, cumm)
        return softmax_last(cumm)

    def causal_windows(x):           # x: [T, H]  ->  im2col [T, K*H]
        wins = []
        for k in range(K):
            d = K - 1 - k            # causal left shift of tap k
            if d == 0:
                wins.append(x)
            else:
                wins.append(jnp.concatenate([pad_rows[d], x[:T - d, :]], axis=0))
        return jnp.concatenate(wins, axis=1)

    # ---- decoder body ----
    embedded = trg + pos                                                  # [T, E]
    conv_input = jnp.tanh(mm_bf16(embedded, w1_ref[...]) + b1_ref[...])   # [T, H]

    # TODO(synk): nn.Dropout is treated as identity (eval mode / p=0).
    attention = None
    for l in range(L):
        win = causal_windows(conv_input).astype(bf16)                     # [T, K*H]
        a = jnp.dot(win, cwa_ref[l], preferred_element_type=f32) + cba_ref[l]
        g = jnp.dot(win, cwg_ref[l], preferred_element_type=f32) + cbg_ref[l]
        conved = a * approx_sigmoid(g)                                    # GLU [T, H]

        # calculate_attention (mask=None)
        conved_emb = jnp.tanh(mm_bf16(conved, w2_ref[...]) + b2_ref[...])  # [T, E]
        energy = mm_f32(conved_emb, enc_conved_t)                         # [T, S]
        attention = faster_forward(softmax_last(energy))                  # [T, S]
        attended = mm_f32(attention, enc_embed)                           # [T, E]
        attended = jnp.tanh(mm_bf16(attended, w3_ref[...]) + b3_ref[...])  # [T, H]
        conved = (conved + attended) * SCALE
        conv_input = (conved + conv_input) * SCALE

    fc = mm_bf16(conv_input, w4_ref[...]) + b4_ref[...]                   # [T, E]
    attended_src = mm_f32(attention, src)                                 # [T, E]
    out = (fc + attended_src) * SCALE

    # lane-dense stores (last dim padded to 128 multiple; wrapper slices back)
    out_ref[0] = _pad_lanes(out, out_ref.shape[-1])
    attn_ref[0] = _pad_lanes(attention, attn_ref.shape[-1])


# --------------------------------------------------------------------------
# Wrapper
# --------------------------------------------------------------------------
@functools.partial(jax.jit, static_argnames=("kernel_size",))
def decoder_forward(src, trg, enc_conved, enc_embed, params, kernel_size):
    f32, bf16 = jnp.float32, jnp.bfloat16
    B, T, E = trg.shape
    S = src.shape[1]
    H = params['w_emb2hid'].shape[1]
    L, K = params['conv_w'].shape[0], kernel_size
    E_pad, S_pad = _round_up(E), _round_up(S)

    # Parameter-only preprocessing, done once in XLA outside the kernel:
    pos_emb = params['pos_emb_table'][:T]                                  # [T, E]
    pad_proj = jnp.tanh(params['pad_vec'] @ params['w_emb2hid']
                        + params['b_emb2hid'])                             # [1, H]
    enc_conved_t = jnp.transpose(enc_conved, (0, 2, 1))                    # [B, E, S]
    conv_w = params['conv_w']                                              # [L, K, H, 2H]
    cwa = conv_w[..., :H].reshape(L, K * H, H).astype(bf16)                # GLU value half
    cwg = conv_w[..., H:].reshape(L, K * H, H).astype(bf16)                # GLU gate half
    cba = params['conv_b'][..., :H]                                        # [L, 1, H]
    cbg = params['conv_b'][..., H:]

    inputs = (
        src, trg, enc_conved_t, enc_embed,                                 # per-batch
        pos_emb, pad_proj,                                                 # shared
        params['w_emb2hid'].astype(bf16), params['b_emb2hid'],
        params['w_attn_h2e'].astype(bf16), params['b_attn_h2e'],
        params['w_attn_e2h'].astype(bf16), params['b_attn_e2h'],
        params['w_fc'].astype(bf16), params['b_fc'],
        cwa, cwg, cba, cbg,
    )

    def batch_spec(shape):
        nd = len(shape)
        return pl.BlockSpec((1,) + tuple(shape[1:]),
                            lambda b, _n=nd: (b,) + (0,) * (_n - 1))

    def shared_spec(shape):
        nd = len(shape)
        return pl.BlockSpec(tuple(shape), lambda b, _n=nd: (0,) * _n)

    in_specs = ([batch_spec(x.shape) for x in inputs[:4]]
                + [shared_spec(x.shape) for x in inputs[4:]])
    out_shape = (jax.ShapeDtypeStruct((B, T, E_pad), f32),
                 jax.ShapeDtypeStruct((B, T, S_pad), f32))
    out_specs = (batch_spec((B, T, E_pad)), batch_spec((B, T, S_pad)))

    kernel = functools.partial(_decoder_kernel, kernel_size=K)
    out_pad, attn_pad = pl.pallas_call(
        kernel,
        out_shape=out_shape,
        grid=(B,),
        in_specs=in_specs,
        out_specs=out_specs,
        compiler_params=pltpu.CompilerParams(
            dimension_semantics=("parallel",)),
    )(*inputs)
    return out_pad[:, :, :E], attn_pad[:, :, :S]


# --------------------------------------------------------------------------
# Pure-JAX f32 reference (faithful port of the PyTorch Decoder.forward)
# --------------------------------------------------------------------------
def _decoder_reference(src, trg, enc_conved, enc_embed, params, kernel_size):
    B, T, E = trg.shape
    S = src.shape[1]
    H = params['w_emb2hid'].shape[1]
    K = kernel_size
    L = params['conv_w'].shape[0]

    def linear(x, w, b):
        return jnp.einsum('bti,io->bto', x, w) + b

    def faster_forward(att):
        att_tm1 = jnp.pad(att, ((0, 0), (1, 0), (0, 0)))[:, :-1, :]
        att_sm1 = jnp.pad(att, ((0, 0), (0, 0), (1, 0)))[:, :, :-1]
        att_tm1_sm1 = jnp.pad(att, ((0, 0), (1, 0), (1, 0)))[:, :-1, :-1]
        interior = att * (att_tm1 + att_sm1 + att_tm1_sm1)
        t = jnp.arange(T)[None, :, None]
        s = jnp.arange(S)[None, None, :]
        cumm = jnp.where((t >= 1) & (s >= 1), interior, 0.0)
        cumm = jnp.where((t == 0) & (s == 0), att, cumm)
        return jax.nn.softmax(cumm, axis=-1)

    pos = params['pos_emb_table'][:T]
    embedded = trg + pos[None]
    conv_input = jnp.tanh(linear(embedded, params['w_emb2hid'], params['b_emb2hid']))
    pad_proj = jnp.tanh(params['pad_vec'] @ params['w_emb2hid'] + params['b_emb2hid'])

    attention = None
    for l in range(L):
        pad_block = jnp.broadcast_to(pad_proj[None], (B, K - 1, H))
        padded = jnp.concatenate([pad_block, conv_input], axis=1)          # [B,T+K-1,H]
        conved2 = sum(jnp.einsum('bth,hc->btc', padded[:, k:k + T, :],
                                 params['conv_w'][l, k]) for k in range(K))
        conved2 = conved2 + params['conv_b'][l]
        a, g = conved2[..., :H], conved2[..., H:]
        conved = a * jax.nn.sigmoid(g)                                     # GLU
        conved_emb = jnp.tanh(linear(conved, params['w_attn_h2e'],
                                     params['b_attn_h2e']))
        energy = jnp.einsum('bte,bse->bts', conved_emb, enc_conved)
        attention = faster_forward(jax.nn.softmax(energy, axis=-1))
        attended = jnp.einsum('bts,bse->bte', attention, enc_embed)
        attended = jnp.tanh(linear(attended, params['w_attn_e2h'],
                                   params['b_attn_e2h']))
        conved = (conved + attended) * SCALE
        conv_input = (conved + conv_input) * SCALE

    fc = linear(conv_input, params['w_fc'], params['b_fc'])
    attended_src = jnp.einsum('bts,bse->bte', attention, src)
    output = (fc + attended_src) * SCALE
    return output, attention


# --------------------------------------------------------------------------
# Deterministic synthetic parameters (Linear weights stored [in, out])
# --------------------------------------------------------------------------
def make_params(key, emb_dim, hid_dim, n_layers, kernel_size, max_length=150):
    ks = jax.random.split(key, 12)

    def nrm(k, shape, s=0.1):
        return s * jax.random.normal(k, shape, dtype=jnp.float32)

    return dict(
        pos_emb_table=nrm(ks[0], (max_length, emb_dim)),
        w_emb2hid=nrm(ks[1], (emb_dim, hid_dim)),
        b_emb2hid=nrm(ks[2], (1, hid_dim)),
        w_attn_h2e=nrm(ks[3], (hid_dim, emb_dim)),
        b_attn_h2e=nrm(ks[4], (1, emb_dim)),
        w_attn_e2h=nrm(ks[5], (emb_dim, hid_dim)),
        b_attn_e2h=nrm(ks[6], (1, hid_dim)),
        w_fc=nrm(ks[7], (hid_dim, emb_dim)),
        b_fc=nrm(ks[8], (1, emb_dim)),
        # Conv1d weights as [n_layers, K, H_in, 2H_out] (torch [2H, H, K] permuted)
        conv_w=nrm(ks[9], (n_layers, kernel_size, hid_dim, 2 * hid_dim)),
        conv_b=nrm(ks[10], (n_layers, 1, 2 * hid_dim)),
        pad_vec=nrm(ks[11], (1, emb_dim)),     # torch pad_vector [1,1,E] flattened
    )
    # NOTE: hid2emb exists in the torch module but is unused in forward().


# --------------------------------------------------------------------------
if __name__ == "__main__":
    B, T, S = 2, 8, 8
    EMB, HID = 32, 32
    N_LAYERS, K = 2, 3

    key = jax.random.PRNGKey(0)
    k_src, k_trg, k_ec, k_ee, k_par = jax.random.split(key, 5)
    src = 0.1 * jax.random.normal(k_src, (B, S, EMB), dtype=jnp.float32)
    trg = 0.1 * jax.random.normal(k_trg, (B, T, EMB), dtype=jnp.float32)
    enc_conved = 0.1 * jax.random.normal(k_ec, (B, S, EMB), dtype=jnp.float32)
    enc_embed = 0.1 * jax.random.normal(k_ee, (B, S, EMB), dtype=jnp.float32)
    params = make_params(k_par, EMB, HID, N_LAYERS, K)

    out, attn = decoder_forward(src, trg, enc_conved, enc_embed, params,
                                kernel_size=K)
    out, attn = jax.block_until_ready((out, attn))

    ref_out, ref_attn = jax.block_until_ready(
        _decoder_reference(src, trg, enc_conved, enc_embed, params, K))
    assert out.shape == (B, T, EMB) and attn.shape == (B, T, S)
    assert bool(jnp.allclose(out, ref_out, rtol=1e-2, atol=1e-2)), "output mismatch"
    assert bool(jnp.allclose(attn, ref_attn, rtol=1e-2, atol=1e-2)), "attention mismatch"

    print("KERNEL_OK")
</pallas_src>

<mosaic_0001>
module attributes {stable_mosaic.version = 11 : i64} {
  func.func @_decoder_kernel(%arg0: i32, %arg1: memref<1x8x32xf32, #tpu.memory_space<vmem>>, %arg2: memref<1x8x32xf32, #tpu.memory_space<vmem>>, %arg3: memref<1x32x8xf32, #tpu.memory_space<vmem>>, %arg4: memref<1x8x32xf32, #tpu.memory_space<vmem>>, %arg5: memref<8x32xf32, #tpu.memory_space<vmem>>, %arg6: memref<1x32xf32, #tpu.memory_space<vmem>>, %arg7: memref<32x32xbf16, #tpu.memory_space<vmem>>, %arg8: memref<1x32xf32, #tpu.memory_space<vmem>>, %arg9: memref<32x32xbf16, #tpu.memory_space<vmem>>, %arg10: memref<1x32xf32, #tpu.memory_space<vmem>>, %arg11: memref<32x32xbf16, #tpu.memory_space<vmem>>, %arg12: memref<1x32xf32, #tpu.memory_space<vmem>>, %arg13: memref<32x32xbf16, #tpu.memory_space<vmem>>, %arg14: memref<1x32xf32, #tpu.memory_space<vmem>>, %arg15: memref<2x96x32xbf16, #tpu.memory_space<vmem>>, %arg16: memref<2x96x32xbf16, #tpu.memory_space<vmem>>, %arg17: memref<2x1x32xf32, #tpu.memory_space<vmem>>, %arg18: memref<2x1x32xf32, #tpu.memory_space<vmem>>, %arg19: memref<1x8x128xf32, #tpu.memory_space<vmem>>, %arg20: memref<1x8x128xf32, #tpu.memory_space<vmem>>) attributes {dimension_semantics = [#tpu.dimension_semantics<parallel>], iteration_bounds = array<i64: 2>, scalar_prefetch = 0 : i64, scratch_operands = 0 : i64, tpu.core_type = #tpu.core_type<tc>, window_params = [{transform_indices = @transform_0, window_bounds = array<i64: 1, 8, 32>}, {transform_indices = @transform_1, window_bounds = array<i64: 1, 8, 32>}, {transform_indices = @transform_2, window_bounds = array<i64: 1, 32, 8>}, {transform_indices = @transform_3, window_bounds = array<i64: 1, 8, 32>}, {pipeline_mode = #tpu.pipeline_mode<synchronous>, transform_indices = @transform_4, window_bounds = array<i64: 8, 32>}, {pipeline_mode = #tpu.pipeline_mode<synchronous>, transform_indices = @transform_5, window_bounds = array<i64: 1, 32>}, {pipeline_mode = #tpu.pipeline_mode<synchronous>, transform_indices = @transform_6, window_bounds = array<i64: 32, 32>}, {pipeline_mode = #tpu.pipeline_mode<synchronous>, transform_indices = @transform_7, window_bounds = array<i64: 1, 32>}, {pipeline_mode = #tpu.pipeline_mode<synchronous>, transform_indices = @transform_8, window_bounds = array<i64: 32, 32>}, {pipeline_mode = #tpu.pipeline_mode<synchronous>, transform_indices = @transform_9, window_bounds = array<i64: 1, 32>}, {pipeline_mode = #tpu.pipeline_mode<synchronous>, transform_indices = @transform_10, window_bounds = array<i64: 32, 32>}, {pipeline_mode = #tpu.pipeline_mode<synchronous>, transform_indices = @transform_11, window_bounds = array<i64: 1, 32>}, {pipeline_mode = #tpu.pipeline_mode<synchronous>, transform_indices = @transform_12, window_bounds = array<i64: 32, 32>}, {pipeline_mode = #tpu.pipeline_mode<synchronous>, transform_indices = @transform_13, window_bounds = array<i64: 1, 32>}, {pipeline_mode = #tpu.pipeline_mode<synchronous>, transform_indices = @transform_14, window_bounds = array<i64: 2, 96, 32>}, {pipeline_mode = #tpu.pipeline_mode<synchronous>, transform_indices = @transform_15, window_bounds = array<i64: 2, 96, 32>}, {pipeline_mode = #tpu.pipeline_mode<synchronous>, transform_indices = @transform_16, window_bounds = array<i64: 2, 1, 32>}, {pipeline_mode = #tpu.pipeline_mode<synchronous>, transform_indices = @transform_17, window_bounds = array<i64: 2, 1, 32>}, {transform_indices = @transform_18, window_bounds = array<i64: 1, 8, 128>}, {transform_indices = @transform_19, window_bounds = array<i64: 1, 8, 128>}]} {
    %c0 = arith.constant 0 : index
    %c0_0 = arith.constant 0 : index
    %c0_1 = arith.constant 0 : index
    %0 = vector.load %arg1[%c0, %c0_0, %c0_1] : memref<1x8x32xf32, #tpu.memory_space<vmem>>, vector<1x8x32xf32>
    %1 = vector.shape_cast %0 : vector<1x8x32xf32> to vector<8x32xf32>
    %c0_2 = arith.constant 0 : index
    %c0_3 = arith.constant 0 : index
    %c0_4 = arith.constant 0 : index
    %2 = vector.load %arg2[%c0_2, %c0_3, %c0_4] : memref<1x8x32xf32, #tpu.memory_space<vmem>>, vector<1x8x32xf32>
    %3 = vector.shape_cast %2 : vector<1x8x32xf32> to vector<8x32xf32>
    %c0_5 = arith.constant 0 : index
    %c0_6 = arith.constant 0 : index
    %c0_7 = arith.constant 0 : index
    %4 = vector.load %arg3[%c0_5, %c0_6, %c0_7] : memref<1x32x8xf32, #tpu.memory_space<vmem>>, vector<1x32x8xf32>
    %5 = vector.shape_cast %4 : vector<1x32x8xf32> to vector<32x8xf32>
    %c0_8 = arith.constant 0 : index
    %c0_9 = arith.constant 0 : index
    %c0_10 = arith.constant 0 : index
    %6 = vector.load %arg4[%c0_8, %c0_9, %c0_10] : memref<1x8x32xf32, #tpu.memory_space<vmem>>, vector<1x8x32xf32>
    %7 = vector.shape_cast %6 : vector<1x8x32xf32> to vector<8x32xf32>
    %c0_11 = arith.constant 0 : index
    %c0_12 = arith.constant 0 : index
    %8 = vector.load %arg5[%c0_11, %c0_12] : memref<8x32xf32, #tpu.memory_space<vmem>>, vector<8x32xf32>
    %c0_13 = arith.constant 0 : index
    %c0_14 = arith.constant 0 : index
    %9 = vector.load %arg6[%c0_13, %c0_14] : memref<1x32xf32, #tpu.memory_space<vmem>>, vector<1x32xf32>
    %10 = tpu.iota {dimensions = array<i32: 0>} : vector<8x8xi32>
    %11 = tpu.iota {dimensions = array<i32: 1>} : vector<8x8xi32>
    %c1_i32 = arith.constant 1 : i32
    %12 = vector.broadcast %c1_i32 : i32 to vector<8x8xi32>
    %13 = arith.cmpi sge, %10, %12 : vector<8x8xi32>
    %c1_i32_15 = arith.constant 1 : i32
    %14 = vector.broadcast %c1_i32_15 : i32 to vector<8x8xi32>
    %15 = arith.cmpi sge, %11, %14 : vector<8x8xi32>
    %16 = arith.andi %13, %15 : vector<8x8xi1>
    %c0_i32 = arith.constant 0 : i32
    %17 = vector.broadcast %c0_i32 : i32 to vector<8x8xi32>
    %18 = arith.cmpi eq, %10, %17 : vector<8x8xi32>
    %c0_i32_16 = arith.constant 0 : i32
    %19 = vector.broadcast %c0_i32_16 : i32 to vector<8x8xi32>
    %20 = arith.cmpi eq, %11, %19 : vector<8x8xi32>
    %21 = arith.andi %18, %20 : vector<8x8xi1>
    %cst = arith.constant 0.000000e+00 : f32
    %22 = vector.broadcast %cst : f32 to vector<1x8xf32>
    %cst_17 = arith.constant 0.000000e+00 : f32
    %23 = vector.broadcast %cst_17 : f32 to vector<8x1xf32>
    %24 = vector.shape_cast %9 : vector<1x32xf32> to vector<1x32xf32>
    %25 = vector.broadcast %24 : vector<1x32xf32> to vector<2x32xf32>
    %26 = arith.addf %3, %8 : vector<8x32xf32>
    %c0_18 = arith.constant 0 : index
    %c0_19 = arith.constant 0 : index
    %27 = vector.load %arg7[%c0_18, %c0_19] : memref<32x32xbf16, #tpu.memory_space<vmem>>, vector<32x32xbf16>
    %28 = arith.truncf %26 : vector<8x32xf32> to vector<8x32xbf16>
    %cst_20 = arith.constant dense<0.000000e+00> : vector<8x32xf32>
    %29 = tpu.matmul %28, %27, %cst_20 {dimension_numbers = #tpu.dot_dimension_numbers<[1], [0], [0], [1], [0, 0, 1, 1], [], []>} : vector<8x32xbf16>, vector<32x32xbf16>, vector<8x32xf32> -> vector<8x32xf32>
    %c0_21 = arith.constant 0 : index
    %c0_22 = arith.constant 0 : index
    %30 = vector.load %arg8[%c0_21, %c0_22] : memref<1x32xf32, #tpu.memory_space<vmem>>, vector<1x32xf32>
    %31 = vector.broadcast %30 : vector<1x32xf32> to vector<8x32xf32>
    %32 = arith.addf %29, %31 : vector<8x32xf32>
    %33 = math.tanh %32 : vector<8x32xf32>
    %34 = vector.extract_strided_slice %33 {offsets = [0, 0], sizes = [6, 32], strides = [1, 1]} : vector<8x32xf32> to vector<6x32xf32>
    %35 = tpu.concatenate %25, %34 in 0 : vector<2x32xf32>, vector<6x32xf32> -> vector<8x32xf32>
    %36 = vector.extract_strided_slice %33 {offsets = [0, 0], sizes = [7, 32], strides = [1, 1]} : vector<8x32xf32> to vector<7x32xf32>
    %37 = tpu.concatenate %9, %36 in 0 : vector<1x32xf32>, vector<7x32xf32> -> vector<8x32xf32>
    %38 = tpu.concatenate %35, %37, %33 in 1 : vector<8x32xf32>, vector<8x32xf32>, vector<8x32xf32> -> vector<8x96xf32>
    %39 = arith.truncf %38 : vector<8x96xf32> to vector<8x96xbf16>
    %c0_23 = arith.constant 0 : index
    %c0_24 = arith.constant 0 : index
    %c0_25 = arith.constant 0 : index
    %40 = vector.load %arg15[%c0_23, %c0_24, %c0_25] : memref<2x96x32xbf16, #tpu.memory_space<vmem>>, vector<1x96x32xbf16>
    %41 = vector.shape_cast %40 : vector<1x96x32xbf16> to vector<96x32xbf16>
    %cst_26 = arith.constant dense<0.000000e+00> : vector<8x32xf32>
    %42 = tpu.matmul %39, %41, %cst_26 {dimension_numbers = #tpu.dot_dimension_numbers<[1], [0], [0], [1], [0, 0, 1, 1], [], []>} : vector<8x96xbf16>, vector<96x32xbf16>, vector<8x32xf32> -> vector<8x32xf32>
    %c0_27 = arith.constant 0 : index
    %c0_28 = arith.constant 0 : index
    %c0_29 = arith.constant 0 : index
    %43 = vector.load %arg17[%c0_27, %c0_28, %c0_29] : memref<2x1x32xf32, #tpu.memory_space<vmem>>, vector<1x1x32xf32>
    %44 = vector.shape_cast %43 : vector<1x1x32xf32> to vector<1x32xf32>
    %45 = vector.broadcast %44 : vector<1x32xf32> to vector<8x32xf32>
    %46 = arith.addf %42, %45 : vector<8x32xf32>
    %c0_30 = arith.constant 0 : index
    %c0_31 = arith.constant 0 : index
    %c0_32 = arith.constant 0 : index
    %47 = vector.load %arg16[%c0_30, %c0_31, %c0_32] : memref<2x96x32xbf16, #tpu.memory_space<vmem>>, vector<1x96x32xbf16>
    %48 = vector.shape_cast %47 : vector<1x96x32xbf16> to vector<96x32xbf16>
    %cst_33 = arith.constant dense<0.000000e+00> : vector<8x32xf32>
    %49 = tpu.matmul %39, %48, %cst_33 {dimension_numbers = #tpu.dot_dimension_numbers<[1], [0], [0], [1], [0, 0, 1, 1], [], []>} : vector<8x96xbf16>, vector<96x32xbf16>, vector<8x32xf32> -> vector<8x32xf32>
    %c0_34 = arith.constant 0 : index
    %c0_35 = arith.constant 0 : index
    %c0_36 = arith.constant 0 : index
    %50 = vector.load %arg18[%c0_34, %c0_35, %c0_36] : memref<2x1x32xf32, #tpu.memory_space<vmem>>, vector<1x1x32xf32>
    %51 = vector.shape_cast %50 : vector<1x1x32xf32> to vector<1x32xf32>
    %52 = vector.broadcast %51 : vector<1x32xf32> to vector<8x32xf32>
    %53 = arith.addf %49, %52 : vector<8x32xf32>
    %cst_37 = arith.constant 0.000000e+00 : f32
    %54 = vector.broadcast %cst_37 : f32 to vector<8x32xf32>
    %55 = arith.subf %54, %53 : vector<8x32xf32>
    %56 = math.exp %55 : vector<8x32xf32>
    %cst_38 = arith.constant 1.000000e+00 : f32
    %57 = vector.broadcast %cst_38 : f32 to vector<8x32xf32>
    %58 = arith.addf %57, %56 : vector<8x32xf32>
    %59 = tpu.reciprocal %58 {approx = true} : vector<8x32xf32> -> vector<8x32xf32>
    %60 = arith.mulf %46, %59 : vector<8x32xf32>
    %c0_39 = arith.constant 0 : index
    %c0_40 = arith.constant 0 : index
    %61 = vector.load %arg9[%c0_39, %c0_40] : memref<32x32xbf16, #tpu.memory_space<vmem>>, vector<32x32xbf16>
    %62 = arith.truncf %60 : vector<8x32xf32> to vector<8x32xbf16>
    %cst_41 = arith.constant dense<0.000000e+00> : vector<8x32xf32>
    %63 = tpu.matmul %62, %61, %cst_41 {dimension_numbers = #tpu.dot_dimension_numbers<[1], [0], [0], [1], [0, 0, 1, 1], [], []>} : vector<8x32xbf16>, vector<32x32xbf16>, vector<8x32xf32> -> vector<8x32xf32>
    %c0_42 = arith.constant 0 : index
    %c0_43 = arith.constant 0 : index
    %64 = vector.load %arg10[%c0_42, %c0_43] : memref<1x32xf32, #tpu.memory_space<vmem>>, vector<1x32xf32>
    %65 = vector.broadcast %64 : vector<1x32xf32> to vector<8x32xf32>
    %66 = arith.addf %63, %65 : vector<8x32xf32>
    %67 = math.tanh %66 : vector<8x32xf32>
    %cst_44 = arith.constant dense<0.000000e+00> : vector<8x8xf32>
    %68 = tpu.matmul %67, %5, %cst_44 {dimension_numbers = #tpu.dot_dimension_numbers<[1], [0], [0], [1], [0, 0, 1, 1], [], []>} : vector<8x32xf32>, vector<32x8xf32>, vector<8x8xf32> -> vector<8x8xf32>
    %cst_45 = arith.constant dense<0xFF800000> : vector<8xf32>
    %69 = vector.multi_reduction <maximumf>, %68, %cst_45 [1] : vector<8x8xf32> to vector<8xf32>
    %70 = vector.shape_cast %69 : vector<8xf32> to vector<8x1xf32>
    %71 = vector.broadcast %70 : vector<8x1xf32> to vector<8x8xf32>
    %72 = arith.subf %68, %71 : vector<8x8xf32>
    %73 = math.exp %72 : vector<8x8xf32>
    %cst_46 = arith.constant dense<0.000000e+00> : vector<8xf32>
    %74 = vector.multi_reduction <add>, %73, %cst_46 [1] : vector<8x8xf32> to vector<8xf32>
    %75 = vector.shape_cast %74 : vector<8xf32> to vector<8x1xf32>
    %76 = tpu.reciprocal %75 {approx = true} : vector<8x1xf32> -> vector<8x1xf32>
    %77 = vector.broadcast %76 : vector<8x1xf32> to vector<8x8xf32>
    %78 = arith.mulf %73, %77 : vector<8x8xf32>
    %79 = vector.extract_strided_slice %78 {offsets = [0, 0], sizes = [7, 8], strides = [1, 1]} : vector<8x8xf32> to vector<7x8xf32>
    %80 = tpu.concatenate %22, %79 in 0 : vector<1x8xf32>, vector<7x8xf32> -> vector<8x8xf32>
    %81 = arith.addf %78, %80 : vector<8x8xf32>
    %82 = vector.extract_strided_slice %81 {offsets = [0, 0], sizes = [8, 7], strides = [1, 1]} : vector<8x8xf32> to vector<8x7xf32>
    %83 = tpu.concatenate %23, %82 in 1 : vector<8x1xf32>, vector<8x7xf32> -> vector<8x8xf32>
    %84 = arith.addf %80, %83 : vector<8x8xf32>
    %85 = arith.mulf %78, %84 : vector<8x8xf32>
    %cst_47 = arith.constant 0.000000e+00 : f32
    %86 = vector.broadcast %cst_47 : f32 to vector<8x8xf32>
    %87 = arith.select %16, %85, %86 : vector<8x8xi1>, vector<8x8xf32>
    %88 = arith.select %21, %78, %87 : vector<8x8xi1>, vector<8x8xf32>
    %cst_48 = arith.constant dense<0xFF800000> : vector<8xf32>
    %89 = vector.multi_reduction <maximumf>, %88, %cst_48 [1] : vector<8x8xf32> to vector<8xf32>
    %90 = vector.shape_cast %89 : vector<8xf32> to vector<8x1xf32>
    %91 = vector.broadcast %90 : vector<8x1xf32> to vector<8x8xf32>
    %92 = arith.subf %88, %91 : vector<8x8xf32>
    %93 = math.exp %92 : vector<8x8xf32>
    %cst_49 = arith.constant dense<0.000000e+00> : vector<8xf32>
    %94 = vector.multi_reduction <add>, %93, %cst_49 [1] : vector<8x8xf32> to vector<8xf32>
    %95 = vector.shape_cast %94 : vector<8xf32> to vector<8x1xf32>
    %96 = tpu.reciprocal %95 {approx = true} : vector<8x1xf32> -> vector<8x1xf32>
    %97 = vector.broadcast %96 : vector<8x1xf32> to vector<8x8xf32>
    %98 = arith.mulf %93, %97 : vector<8x8xf32>
    %cst_50 = arith.constant dense<0.000000e+00> : vector<8x32xf32>
    %99 = tpu.matmul %98, %7, %cst_50 {dimension_numbers = #tpu.dot_dimension_numbers<[1], [0], [0], [1], [0, 0, 1, 1], [], []>} : vector<8x8xf32>, vector<8x32xf32>, vector<8x32xf32> -> vector<8x32xf32>
    %c0_51 = arith.constant 0 : index
    %c0_52 = arith.constant 0 : index
    %100 = vector.load %arg11[%c0_51, %c0_52] : memref<32x32xbf16, #tpu.memory_space<vmem>>, vector<32x32xbf16>
    %101 = arith.truncf %99 : vector<8x32xf32> to vector<8x32xbf16>
    %cst_53 = arith.constant dense<0.000000e+00> : vector<8x32xf32>
    %102 = tpu.matmul %101, %100, %cst_53 {dimension_numbers = #tpu.dot_dimension_numbers<[1], [0], [0], [1], [0, 0, 1, 1], [], []>} : vector<8x32xbf16>, vector<32x32xbf16>, vector<8x32xf32> -> vector<8x32xf32>
    %c0_54 = arith.constant 0 : index
    %c0_55 = arith.constant 0 : index
    %103 = vector.load %arg12[%c0_54, %c0_55] : memref<1x32xf32, #tpu.memory_space<vmem>>, vector<1x32xf32>
    %104 = vector.broadcast %103 : vector<1x32xf32> to vector<8x32xf32>
    %105 = arith.addf %102, %104 : vector<8x32xf32>
    %106 = math.tanh %105 : vector<8x32xf32>
    %107 = arith.addf %60, %106 : vector<8x32xf32>
    %cst_56 = arith.constant 0.707106769 : f32
    %108 = vector.broadcast %cst_56 : f32 to vector<8x32xf32>
    %109 = arith.mulf %107, %108 : vector<8x32xf32>
    %110 = arith.addf %109, %33 : vector<8x32xf32>
    %cst_57 = arith.constant 0.707106769 : f32
    %111 = vector.broadcast %cst_57 : f32 to vector<8x32xf32>
    %112 = arith.mulf %110, %111 : vector<8x32xf32>
    %113 = vector.extract_strided_slice %112 {offsets = [0, 0], sizes = [6, 32], strides = [1, 1]} : vector<8x32xf32> to vector<6x32xf32>
    %114 = tpu.concatenate %25, %113 in 0 : vector<2x32xf32>, vector<6x32xf32> -> vector<8x32xf32>
    %115 = vector.extract_strided_slice %112 {offsets = [0, 0], sizes = [7, 32], strides = [1, 1]} : vector<8x32xf32> to vector<7x32xf32>
    %116 = tpu.concatenate %9, %115 in 0 : vector<1x32xf32>, vector<7x32xf32> -> vector<8x32xf32>
    %117 = tpu.concatenate %114, %116, %112 in 1 : vector<8x32xf32>, vector<8x32xf32>, vector<8x32xf32> -> vector<8x96xf32>
    %118 = arith.truncf %117 : vector<8x96xf32> to vector<8x96xbf16>
    %c1 = arith.constant 1 : index
    %c0_58 = arith.constant 0 : index
    %c0_59 = arith.constant 0 : index
    %119 = vector.load %arg15[%c1, %c0_58, %c0_59] : memref<2x96x32xbf16, #tpu.memory_space<vmem>>, vector<1x96x32xbf16>
    %120 = vector.shape_cast %119 : vector<1x96x32xbf16> to vector<96x32xbf16>
    %cst_60 = arith.constant dense<0.000000e+00> : vector<8x32xf32>
    %121 = tpu.matmul %118, %120, %cst_60 {dimension_numbers = #tpu.dot_dimension_numbers<[1], [0], [0], [1], [0, 0, 1, 1], [], []>} : vector<8x96xbf16>, vector<96x32xbf16>, vector<8x32xf32> -> vector<8x32xf32>
    %c1_61 = arith.constant 1 : index
    %c0_62 = arith.constant 0 : index
    %c0_63 = arith.constant 0 : index
    %122 = vector.load %arg17[%c1_61, %c0_62, %c0_63] : memref<2x1x32xf32, #tpu.memory_space<vmem>>, vector<1x1x32xf32>
    %123 = vector.shape_cast %122 : vector<1x1x32xf32> to vector<1x32xf32>
    %124 = vector.broadcast %123 : vector<1x32xf32> to vector<8x32xf32>
    %125 = arith.addf %121, %124 : vector<8x32xf32>
    %c1_64 = arith.constant 1 : index
    %c0_65 = arith.constant 0 : index
    %c0_66 = arith.constant 0 : index
    %126 = vector.load %arg16[%c1_64, %c0_65, %c0_66] : memref<2x96x32xbf16, #tpu.memory_space<vmem>>, vector<1x96x32xbf16>
    %127 = vector.shape_cast %126 : vector<1x96x32xbf16> to vector<96x32xbf16>
    %cst_67 = arith.constant dense<0.000000e+00> : vector<8x32xf32>
    %128 = tpu.matmul %118, %127, %cst_67 {dimension_numbers = #tpu.dot_dimension_numbers<[1], [0], [0], [1], [0, 0, 1, 1], [], []>} : vector<8x96xbf16>, vector<96x32xbf16>, vector<8x32xf32> -> vector<8x32xf32>
    %c1_68 = arith.constant 1 : index
    %c0_69 = arith.constant 0 : index
    %c0_70 = arith.constant 0 : index
    %129 = vector.load %arg18[%c1_68, %c0_69, %c0_70] : memref<2x1x32xf32, #tpu.memory_space<vmem>>, vector<1x1x32xf32>
    %130 = vector.shape_cast %129 : vector<1x1x32xf32> to vector<1x32xf32>
    %131 = vector.broadcast %130 : vector<1x32xf32> to vector<8x32xf32>
    %132 = arith.addf %128, %131 : vector<8x32xf32>
    %cst_71 = arith.constant 0.000000e+00 : f32
    %133 = vector.broadcast %cst_71 : f32 to vector<8x32xf32>
    %134 = arith.subf %133, %132 : vector<8x32xf32>
    %135 = math.exp %134 : vector<8x32xf32>
    %cst_72 = arith.constant 1.000000e+00 : f32
    %136 = vector.broadcast %cst_72 : f32 to vector<8x32xf32>
    %137 = arith.addf %136, %135 : vector<8x32xf32>
    %138 = tpu.reciprocal %137 {approx = true} : vector<8x32xf32> -> vector<8x32xf32>
    %139 = arith.mulf %125, %138 : vector<8x32xf32>
    %c0_73 = arith.constant 0 : index
    %c0_74 = arith.constant 0 : index
    %140 = vector.load %arg9[%c0_73, %c0_74] : memref<32x32xbf16, #tpu.memory_space<vmem>>, vector<32x32xbf16>
    %141 = arith.truncf %139 : vector<8x32xf32> to vector<8x32xbf16>
    %cst_75 = arith.constant dense<0.000000e+00> : vector<8x32xf32>
    %142 = tpu.matmul %141, %140, %cst_75 {dimension_numbers = #tpu.dot_dimension_numbers<[1], [0], [0], [1], [0, 0, 1, 1], [], []>} : vector<8x32xbf16>, vector<32x32xbf16>, vector<8x32xf32> -> vector<8x32xf32>
    %c0_76 = arith.constant 0 : index
    %c0_77 = arith.constant 0 : index
    %143 = vector.load %arg10[%c0_76, %c0_77] : memref<1x32xf32, #tpu.memory_space<vmem>>, vector<1x32xf32>
    %144 = vector.broadcast %143 : vector<1x32xf32> to vector<8x32xf32>
    %145 = arith.addf %142, %144 : vector<8x32xf32>
    %146 = math.tanh %145 : vector<8x32xf32>
    %cst_78 = arith.constant dense<0.000000e+00> : vector<8x8xf32>
    %147 = tpu.matmul %146, %5, %cst_78 {dimension_numbers = #tpu.dot_dimension_numbers<[1], [0], [0], [1], [0, 0, 1, 1], [], []>} : vector<8x32xf32>, vector<32x8xf32>, vector<8x8xf32> -> vector<8x8xf32>
    %cst_79 = arith.constant dense<0xFF800000> : vector<8xf32>
    %148 = vector.multi_reduction <maximumf>, %147, %cst_79 [1] : vector<8x8xf32> to vector<8xf32>
    %149 = vector.shape_cast %148 : vector<8xf32> to vector<8x1xf32>
    %150 = vector.broadcast %149 : vector<8x1xf32> to vector<8x8xf32>
    %151 = arith.subf %147, %150 : vector<8x8xf32>
    %152 = math.exp %151 : vector<8x8xf32>
    %cst_80 = arith.constant dense<0.000000e+00> : vector<8xf32>
    %153 = vector.multi_reduction <add>, %152, %cst_80 [1] : vector<8x8xf32> to vector<8xf32>
    %154 = vector.shape_cast %153 : vector<8xf32> to vector<8x1xf32>
    %155 = tpu.reciprocal %154 {approx = true} : vector<8x1xf32> -> vector<8x1xf32>
    %156 = vector.broadcast %155 : vector<8x1xf32> to vector<8x8xf32>
    %157 = arith.mulf %152, %156 : vector<8x8xf32>
    %158 = vector.extract_strided_slice %157 {offsets = [0, 0], sizes = [7, 8], strides = [1, 1]} : vector<8x8xf32> to vector<7x8xf32>
    %159 = tpu.concatenate %22, %158 in 0 : vector<1x8xf32>, vector<7x8xf32> -> vector<8x8xf32>
    %160 = arith.addf %157, %159 : vector<8x8xf32>
    %161 = vector.extract_strided_slice %160 {offsets = [0, 0], sizes = [8, 7], strides = [1, 1]} : vector<8x8xf32> to vector<8x7xf32>
    %162 = tpu.concatenate %23, %161 in 1 : vector<8x1xf32>, vector<8x7xf32> -> vector<8x8xf32>
    %163 = arith.addf %159, %162 : vector<8x8xf32>
    %164 = arith.mulf %157, %163 : vector<8x8xf32>
    %cst_81 = arith.constant 0.000000e+00 : f32
    %165 = vector.broadcast %cst_81 : f32 to vector<8x8xf32>
    %166 = arith.select %16, %164, %165 : vector<8x8xi1>, vector<8x8xf32>
    %167 = arith.select %21, %157, %166 : vector<8x8xi1>, vector<8x8xf32>
    %cst_82 = arith.constant dense<0xFF800000> : vector<8xf32>
    %168 = vector.multi_reduction <maximumf>, %167, %cst_82 [1] : vector<8x8xf32> to vector<8xf32>
    %169 = vector.shape_cast %168 : vector<8xf32> to vector<8x1xf32>
    %170 = vector.broadcast %169 : vector<8x1xf32> to vector<8x8xf32>
    %171 = arith.subf %167, %170 : vector<8x8xf32>
    %172 = math.exp %171 : vector<8x8xf32>
    %cst_83 = arith.constant dense<0.000000e+00> : vector<8xf32>
    %173 = vector.multi_reduction <add>, %172, %cst_83 [1] : vector<8x8xf32> to vector<8xf32>
    %174 = vector.shape_cast %173 : vector<8xf32> to vector<8x1xf32>
    %175 = tpu.reciprocal %174 {approx = true} : vector<8x1xf32> -> vector<8x1xf32>
    %176 = vector.broadcast %175 : vector<8x1xf32> to vector<8x8xf32>
    %177 = arith.mulf %172, %176 : vector<8x8xf32>
    %cst_84 = arith.constant dense<0.000000e+00> : vector<8x32xf32>
    %178 = tpu.matmul %177, %7, %cst_84 {dimension_numbers = #tpu.dot_dimension_numbers<[1], [0], [0], [1], [0, 0, 1, 1], [], []>} : vector<8x8xf32>, vector<8x32xf32>, vector<8x32xf32> -> vector<8x32xf32>
    %c0_85 = arith.constant 0 : index
    %c0_86 = arith.constant 0 : index
    %179 = vector.load %arg11[%c0_85, %c0_86] : memref<32x32xbf16, #tpu.memory_space<vmem>>, vector<32x32xbf16>
    %180 = arith.truncf %178 : vector<8x32xf32> to vector<8x32xbf16>
    %cst_87 = arith.constant dense<0.000000e+00> : vector<8x32xf32>
    %181 = tpu.matmul %180, %179, %cst_87 {dimension_numbers = #tpu.dot_dimension_numbers<[1], [0], [0], [1], [0, 0, 1, 1], [], []>} : vector<8x32xbf16>, vector<32x32xbf16>, vector<8x32xf32> -> vector<8x32xf32>
    %c0_88 = arith.constant 0 : index
    %c0_89 = arith.constant 0 : index
    %182 = vector.load %arg12[%c0_88, %c0_89] : memref<1x32xf32, #tpu.memory_space<vmem>>, vector<1x32xf32>
    %183 = vector.broadcast %182 : vector<1x32xf32> to vector<8x32xf32>
    %184 = arith.addf %181, %183 : vector<8x32xf32>
    %185 = math.tanh %184 : vector<8x32xf32>
    %186 = arith.addf %139, %185 : vector<8x32xf32>
    %cst_90 = arith.constant 0.707106769 : f32
    %187 = vector.broadcast %cst_90 : f32 to vector<8x32xf32>
    %188 = arith.mulf %186, %187 : vector<8x32xf32>
    %189 = arith.addf %188, %112 : vector<8x32xf32>
    %cst_91 = arith.constant 0.707106769 : f32
    %190 = vector.broadcast %cst_91 : f32 to vector<8x32xf32>
    %191 = arith.mulf %189, %190 : vector<8x32xf32>
    %c0_92 = arith.constant 0 : index
    %c0_93 = arith.constant 0 : index
    %192 = vector.load %arg13[%c0_92, %c0_93] : memref<32x32xbf16, #tpu.memory_space<vmem>>, vector<32x32xbf16>
    %193 = arith.truncf %191 : vector<8x32xf32> to vector<8x32xbf16>
    %cst_94 = arith.constant dense<0.000000e+00> : vector<8x32xf32>
    %194 = tpu.matmul %193, %192, %cst_94 {dimension_numbers = #tpu.dot_dimension_numbers<[1], [0], [0], [1], [0, 0, 1, 1], [], []>} : vector<8x32xbf16>, vector<32x32xbf16>, vector<8x32xf32> -> vector<8x32xf32>
    %c0_95 = arith.constant 0 : index
    %c0_96 = arith.constant 0 : index
    %195 = vector.load %arg14[%c0_95, %c0_96] : memref<1x32xf32, #tpu.memory_space<vmem>>, vector<1x32xf32>
    %196 = vector.broadcast %195 : vector<1x32xf32> to vector<8x32xf32>
    %197 = arith.addf %194, %196 : vector<8x32xf32>
    %cst_97 = arith.constant dense<0.000000e+00> : vector<8x32xf32>
    %198 = tpu.matmul %177, %1, %cst_97 {dimension_numbers = #tpu.dot_dimension_numbers<[1], [0], [0], [1], [0, 0, 1, 1], [], []>} : vector<8x8xf32>, vector<8x32xf32>, vector<8x32xf32> -> vector<8x32xf32>
    %199 = arith.addf %197, %198 : vector<8x32xf32>
    %cst_98 = arith.constant 0.707106769 : f32
    %200 = vector.broadcast %cst_98 : f32 to vector<8x32xf32>
    %201 = arith.mulf %199, %200 : vector<8x32xf32>
    %cst_99 = arith.constant 0.000000e+00 : f32
    %202 = vector.broadcast %cst_99 : f32 to vector<8x96xf32>
    %203 = tpu.concatenate %201, %202 in 1 : vector<8x32xf32>, vector<8x96xf32> -> vector<8x128xf32>
    %c0_100 = arith.constant 0 : index
    %c0_101 = arith.constant 0 : index
    %c0_102 = arith.constant 0 : index
    %204 = vector.load %arg19[%c0_100, %c0_101, %c0_102] : memref<1x8x128xf32, #tpu.memory_space<vmem>>, vector<1x8x128xf32>
    %205 = vector.shape_cast %204 : vector<1x8x128xf32> to vector<8x128xf32>
    %206 = vector.shape_cast %203 : vector<8x128xf32> to vector<1x8x128xf32>
    tpu.vector_store %arg19[%c0_100, %c0_101, %c0_102], %206 {strides = array<i32>} : memref<1x8x128xf32, #tpu.memory_space<vmem>>, vector<1x8x128xf32>,
    %cst_103 = arith.constant 0.000000e+00 : f32
    %207 = vector.broadcast %cst_103 : f32 to vector<8x120xf32>
    %208 = tpu.concatenate %177, %207 in 1 : vector<8x8xf32>, vector<8x120xf32> -> vector<8x128xf32>
    %c0_104 = arith.constant 0 : index
    %c0_105 = arith.constant 0 : index
    %c0_106 = arith.constant 0 : index
    %209 = vector.load %arg20[%c0_104, %c0_105, %c0_106] : memref<1x8x128xf32, #tpu.memory_space<vmem>>, vector<1x8x128xf32>
    %210 = vector.shape_cast %209 : vector<1x8x128xf32> to vector<8x128xf32>
    %211 = vector.shape_cast %208 : vector<8x128xf32> to vector<1x8x128xf32>
    tpu.vector_store %arg20[%c0_104, %c0_105, %c0_106], %211 {strides = array<i32>} : memref<1x8x128xf32, #tpu.memory_space<vmem>>, vector<1x8x128xf32>,
    return
  }
  func.func @transform_0(%arg0: i32) -> (i32, i32, i32) {
    %c0_i32 = arith.constant 0 : i32
    %c0_i32_0 = arith.constant 0 : i32
    %c0_i32_1 = arith.constant 0 : i32
    return %arg0, %c0_i32, %c0_i32_0 : i32, i32, i32
  }
  func.func @transform_1(%arg0: i32) -> (i32, i32, i32) {
    %c0_i32 = arith.constant 0 : i32
    %c0_i32_0 = arith.constant 0 : i32
    %c0_i32_1 = arith.constant 0 : i32
    return %arg0, %c0_i32, %c0_i32_0 : i32, i32, i32
  }
  func.func @transform_2(%arg0: i32) -> (i32, i32, i32) {
    %c0_i32 = arith.constant 0 : i32
    %c0_i32_0 = arith.constant 0 : i32
    %c0_i32_1 = arith.constant 0 : i32
    return %arg0, %c0_i32, %c0_i32_0 : i32, i32, i32
  }
  func.func @transform_3(%arg0: i32) -> (i32, i32, i32) {
    %c0_i32 = arith.constant 0 : i32
    %c0_i32_0 = arith.constant 0 : i32
    %c0_i32_1 = arith.constant 0 : i32
    return %arg0, %c0_i32, %c0_i32_0 : i32, i32, i32
  }
  func.func @transform_4(%arg0: i32) -> (i32, i32) {
    %c0_i32 = arith.constant 0 : i32
    %c0_i32_0 = arith.constant 0 : i32
    %c0_i32_1 = arith.constant 0 : i32
    return %c0_i32, %c0_i32_0 : i32, i32
  }
  func.func @transform_5(%arg0: i32) -> (i32, i32) {
    %c0_i32 = arith.constant 0 : i32
    %c0_i32_0 = arith.constant 0 : i32
    %c0_i32_1 = arith.constant 0 : i32
    return %c0_i32, %c0_i32_0 : i32, i32
  }
  func.func @transform_6(%arg0: i32) -> (i32, i32) {
    %c0_i32 = arith.constant 0 : i32
    %c0_i32_0 = arith.constant 0 : i32
    %c0_i32_1 = arith.constant 0 : i32
    return %c0_i32, %c0_i32_0 : i32, i32
  }
  func.func @transform_7(%arg0: i32) -> (i32, i32) {
    %c0_i32 = arith.constant 0 : i32
    %c0_i32_0 = arith.constant 0 : i32
    %c0_i32_1 = arith.constant 0 : i32
    return %c0_i32, %c0_i32_0 : i32, i32
  }
  func.func @transform_8(%arg0: i32) -> (i32, i32) {
    %c0_i32 = arith.constant 0 : i32
    %c0_i32_0 = arith.constant 0 : i32
    %c0_i32_1 = arith.constant 0 : i32
    return %c0_i32, %c0_i32_0 : i32, i32
  }
  func.func @transform_9(%arg0: i32) -> (i32, i32) {
    %c0_i32 = arith.constant 0 : i32
    %c0_i32_0 = arith.constant 0 : i32
    %c0_i32_1 = arith.constant 0 : i32
    return %c0_i32, %c0_i32_0 : i32, i32
  }
  func.func @transform_10(%arg0: i32) -> (i32, i32) {
    %c0_i32 = arith.constant 0 : i32
    %c0_i32_0 = arith.constant 0 : i32
    %c0_i32_1 = arith.constant 0 : i32
    return %c0_i32, %c0_i32_0 : i32, i32
  }
  func.func @transform_11(%arg0: i32) -> (i32, i32) {
    %c0_i32 = arith.constant 0 : i32
    %c0_i32_0 = arith.constant 0 : i32
    %c0_i32_1 = arith.constant 0 : i32
    return %c0_i32, %c0_i32_0 : i32, i32
  }
  func.func @transform_12(%arg0: i32) -> (i32, i32) {
    %c0_i32 = arith.constant 0 : i32
    %c0_i32_0 = arith.constant 0 : i32
    %c0_i32_1 = arith.constant 0 : i32
    return %c0_i32, %c0_i32_0 : i32, i32
  }
  func.func @transform_13(%arg0: i32) -> (i32, i32) {
    %c0_i32 = arith.constant 0 : i32
    %c0_i32_0 = arith.constant 0 : i32
    %c0_i32_1 = arith.constant 0 : i32
    return %c0_i32, %c0_i32_0 : i32, i32
  }
  func.func @transform_14(%arg0: i32) -> (i32, i32, i32) {
    %c0_i32 = arith.constant 0 : i32
    %c0_i32_0 = arith.constant 0 : i32
    %c0_i32_1 = arith.constant 0 : i32
    %c0_i32_2 = arith.constant 0 : i32
    return %c0_i32, %c0_i32_0, %c0_i32_1 : i32, i32, i32
  }
  func.func @transform_15(%arg0: i32) -> (i32, i32, i32) {
    %c0_i32 = arith.constant 0 : i32
    %c0_i32_0 = arith.constant 0 : i32
    %c0_i32_1 = arith.constant 0 : i32
    %c0_i32_2 = arith.constant 0 : i32
    return %c0_i32, %c0_i32_0, %c0_i32_1 : i32, i32, i32
  }
  func.func @transform_16(%arg0: i32) -> (i32, i32, i32) {
    %c0_i32 = arith.constant 0 : i32
    %c0_i32_0 = arith.constant 0 : i32
    %c0_i32_1 = arith.constant 0 : i32
    %c0_i32_2 = arith.constant 0 : i32
    return %c0_i32, %c0_i32_0, %c0_i32_1 : i32, i32, i32
  }
  func.func @transform_17(%arg0: i32) -> (i32, i32, i32) {
    %c0_i32 = arith.constant 0 : i32
    %c0_i32_0 = arith.constant 0 : i32
    %c0_i32_1 = arith.constant 0 : i32
    %c0_i32_2 = arith.constant 0 : i32
    return %c0_i32, %c0_i32_0, %c0_i32_1 : i32, i32, i32
  }
  func.func @transform_18(%arg0: i32) -> (i32, i32, i32) {
    %c0_i32 = arith.constant 0 : i32
    %c0_i32_0 = arith.constant 0 : i32
    %c0_i32_1 = arith.constant 0 : i32
    return %arg0, %c0_i32, %c0_i32_0 : i32, i32, i32
  }
  func.func @transform_19(%arg0: i32) -> (i32, i32, i32) {
    %c0_i32 = arith.constant 0 : i32
    %c0_i32_0 = arith.constant 0 : i32
    %c0_i32_1 = arith.constant 0 : i32
    return %arg0, %c0_i32, %c0_i32_0 : i32, i32, i32
  }
}

</mosaic_0001>

<llo_original>
// kernel: decoder_forward.1
$region0: #{decoder_forward.1}
  #allocation0 [shape = 'u32[]', space=smem, size = 0x4, offset = 0x4, fixed_abs, tag = 'smem constant byte address 0x4 - core index']
  #allocation1 [shape = 'u32[72,128]{1,0:T(1,128)}', space=vmem, size = 0x9000, scoped, tag = 'internal scratch']
  %s0 = inlined_call_operand.vmem [shape: f32[2,8,32], index: 0, kind: input, shape index: {}]
  %s1 = inlined_call_operand.vmem [shape: f32[2,8,32], index: 1, kind: input, shape index: {}]
  %s2 = inlined_call_operand.vmem [shape: f32[2,32,8], index: 2, kind: input, shape index: {}]
  %s3 = inlined_call_operand.vmem [shape: f32[2,8,32], index: 3, kind: input, shape index: {}]
  %s4 = inlined_call_operand.vmem [shape: f32[8,32], index: 4, kind: input, shape index: {}]
  %s5 = inlined_call_operand.vmem [shape: f32[1,32], index: 5, kind: input, shape index: {}]
  %s6 = inlined_call_operand.vmem [shape: bf16[32,32], index: 6, kind: input, shape index: {}]
  %s7 = inlined_call_operand.vmem [shape: f32[1,32], index: 7, kind: input, shape index: {}]
  %s8 = inlined_call_operand.vmem [shape: bf16[32,32], index: 8, kind: input, shape index: {}]
  %s9 = inlined_call_operand.vmem [shape: f32[1,32], index: 9, kind: input, shape index: {}]
  %s10 = inlined_call_operand.vmem [shape: bf16[32,32], index: 10, kind: input, shape index: {}]
  %s11 = inlined_call_operand.vmem [shape: f32[1,32], index: 11, kind: input, shape index: {}]
  %s12 = inlined_call_operand.vmem [shape: bf16[32,32], index: 12, kind: input, shape index: {}]
  %s13 = inlined_call_operand.vmem [shape: f32[1,32], index: 13, kind: input, shape index: {}]
  %s14 = inlined_call_operand.vmem [shape: bf16[2,96,32], index: 14, kind: input, shape index: {}]
  %s15 = inlined_call_operand.vmem [shape: bf16[2,96,32], index: 15, kind: input, shape index: {}]
  %s16 = inlined_call_operand.vmem [shape: f32[2,1,32], index: 16, kind: input, shape index: {}]
  %s17 = inlined_call_operand.vmem [shape: f32[2,1,32], index: 17, kind: input, shape index: {}]
  %s18 = inlined_call_operand.hbm [shape: f32[2,8,128], index: 18, kind: output, shape index: {0}]
  %s19 = inlined_call_operand.hbm [shape: f32[2,8,128], index: 19, kind: output, shape index: {1}]
  %20 = xla_tuple %s18, %s19
  %s21 = sld [smem:[#allocation0]]
  $region113: #{decoder_forward.1} parent=0
    _
  %s23 = ssub.s32 1, %s21
  %s24 = scalar_select 0, %s23, %s21
  $region1: #{decoder_forward.1} parent=0
    #allocation2 [shape = 'u8[8192]{0}', space=vmem, size = 0x2000, scoped, tag = 'output window, operand 0']
    #allocation3 [shape = 's32[2]{0}', space=sflag, size = 0x8, scoped, tag = 'scoped memory for decoder_forward.1']
    #allocation4 [shape = 'u8[8192]{0}', space=vmem, size = 0x2000, scoped, tag = 'output window, operand 1']
    #allocation5 [shape = 's32[2]{0}', space=sflag, size = 0x8, scoped, tag = 'scoped memory for decoder_forward.1']
    %25 = vsyncpa [#allocation3], 0
    %s26 = scalar_lea.sflag [#allocation3], 1
    %27 = vsyncpa %s26, 0
    %28 = vsyncpa [#allocation5], 0
    %s29 = scalar_lea.sflag [#allocation5], 1
    %30 = vsyncpa %s29, 0
    loop: start=0, step=1, limit=4
    $region2: #{decoder_forward.1} parent=1 // loop_pre_header
      _
    $region3: #{decoder_forward.1} parent=1 // loop_header
      %s32 = sphi 0, %s36
      %p33 = scmp.ge.s32.totalorder %s32, 4
      %s42 = sphi 0, %s44
      %s45 = sphi 0, %s42
      %s46 = sphi 0, %s45
      %s62 = sphi 0, %s46
      %s68 = sphi 0, %s70
      %s71 = sphi 0, %s68
      %s72 = sphi 0, %s71
      %s88 = sphi 0, %s72
      %s94 = sphi 0, %s96
      %s97 = sphi 0, %s94
      %s98 = sphi 0, %s97
      %s114 = sphi 0, %s98
      %s120 = sphi 0, %s122
      %s123 = sphi 0, %s120
      %s124 = sphi 0, %s123
      %s140 = sphi 0, %s124
      %s144 = sphi 0, %s144
      %s146 = sphi 0, %s144
      %s147 = sphi 0, %s146
      %s161 = sphi 0, %s147
      %s165 = sphi 0, %s165
      %s167 = sphi 0, %s165
      %s168 = sphi 0, %s167
      %s182 = sphi 0, %s168
      %s186 = sphi 0, %s186
      %s188 = sphi 0, %s186
      %s189 = sphi 0, %s188
      %s203 = sphi 0, %s189
      %s207 = sphi 0, %s207
      %s209 = sphi 0, %s207
      %s210 = sphi 0, %s209
      %s224 = sphi 0, %s210
      %s228 = sphi 0, %s228
      %s230 = sphi 0, %s228
      %s231 = sphi 0, %s230
      %s245 = sphi 0, %s231
      %s249 = sphi 0, %s249
      %s251 = sphi 0, %s249
      %s252 = sphi 0, %s251
      %s266 = sphi 0, %s252
      %s270 = sphi 0, %s270
      %s272 = sphi 0, %s270
      %s273 = sphi 0, %s272
      %s287 = sphi 0, %s273
      %s291 = sphi 0, %s291
      %s293 = sphi 0, %s291
      %s294 = sphi 0, %s293
      %s308 = sphi 0, %s294
      %s312 = sphi 0, %s312
      %s314 = sphi 0, %s312
      %s315 = sphi 0, %s314
      %s329 = sphi 0, %s315
      %s333 = sphi 0, %s333
      %s335 = sphi 0, %s333
      %s336 = sphi 0, %s335
      %s350 = sphi 0, %s336
      %s354 = sphi 0, %s354
      %s356 = sphi 0, %s354
      %s357 = sphi 0, %s356
      %s371 = sphi 0, %s357
      %s375 = sphi 0, %s375
      %s377 = sphi 0, %s375
      %s378 = sphi 0, %s377
      %s392 = sphi 0, %s378
      %s396 = sphi 0, %s396
      %s398 = sphi 0, %s396
      %s399 = sphi 0, %s398
      %s413 = sphi 0, %s399
      %s417 = sphi 0, %s417
      %s419 = sphi 0, %s417
      %s420 = sphi 0, %s419
      %s434 = sphi 0, %s420
      %s440 = sphi 0, %s442
      %s443 = sphi 0, %s440
      %s444 = sphi 0, %s443
      %s460 = sphi 0, %s444
      %s466 = sphi 0, %s468
      %s469 = sphi 0, %s466
      %s470 = sphi 0, %s469
      %s486 = sphi 0, %s470
    $region4: #{decoder_forward.1} parent=1 // loop_header_branch
      %35 = sbr.rel (%p33) target = $region8
    $region5: #{decoder_forward.1} parent=1 // loop_body
      %s37 = ssub.s32 %s32, 1
      %s38 = ssub.s32 %s32, 2
      %s39 = sadd.s32 %s32, 1
      %s40 = ssub.s32 %s32, %s39
      %p41 = scmp.eq.s32.totalorder %s40, 0
      %s43 = sadd.s32 %s42, 1
      %s44 = scalar_select %p41, %s42, %s43
      %p47 = pneg %p41
      %p48 = scmp.eq.s32.totalorder %s32, 1
      %p49 = por %p47, %p48
      %p50 = scmp.ne.s32.totalorder %s42, %s45
      %p51 = scmp.eq.s32.totalorder %s32, 0
      %p52 = por %p50, %p51
      %p53 = scmp.ne.s32.totalorder %s42, %s45
      %p54 = scmp.eq.s32.totalorder %s37, 1
      %p55 = por %p53, %p54
      %p56 = scmp.ne.s32.totalorder %s45, %s46
      %p57 = scmp.eq.s32.totalorder %s37, 0
      %p58 = por %p56, %p57
      %p59 = scmp.ne.s32.totalorder %s45, %s46
      %p60 = scmp.eq.s32.totalorder %s38, 1
      %p61 = por %p59, %p60
      %p63 = scmp.ne.s32.totalorder %s46, %s62
      %p64 = scmp.eq.s32.totalorder %s38, 0
      %p65 = por %p63, %p64
      %s66 = ssub.s32 %s32, %s39
      %p67 = scmp.eq.s32.totalorder %s66, 0
      %s69 = sadd.s32 %s68, 1
      %s70 = scalar_select %p67, %s68, %s69
      %p73 = pneg %p67
      %p74 = scmp.eq.s32.totalorder %s32, 1
      %p75 = por %p73, %p74
      %p76 = scmp.ne.s32.totalorder %s68, %s71
      %p77 = scmp.eq.s32.totalorder %s32, 0
      %p78 = por %p76, %p77
      %p79 = scmp.ne.s32.totalorder %s68, %s71
      %p80 = scmp.eq.s32.totalorder %s37, 1
      %p81 = por %p79, %p80
      %p82 = scmp.ne.s32.totalorder %s71, %s72
      %p83 = scmp.eq.s32.totalorder %s37, 0
      %p84 = por %p82, %p83
      %p85 = scmp.ne.s32.totalorder %s71, %s72
      %p86 = scmp.eq.s32.totalorder %s38, 1
      %p87 = por %p85, %p86
      %p89 = scmp.ne.s32.totalorder %s72, %s88
      %p90 = scmp.eq.s32.totalorder %s38, 0
      %p91 = por %p89, %p90
      %s92 = ssub.s32 %s32, %s39
      %p93 = scmp.eq.s32.totalorder %s92, 0
      %s95 = sadd.s32 %s94, 1
      %s96 = scalar_select %p93, %s94, %s95
      %p99 = pneg %p93
      %p100 = scmp.eq.s32.totalorder %s32, 1
      %p101 = por %p99, %p100
      %p102 = scmp.ne.s32.totalorder %s94, %s97
      %p103 = scmp.eq.s32.totalorder %s32, 0
      %p104 = por %p102, %p103
      %p105 = scmp.ne.s32.totalorder %s94, %s97
      %p106 = scmp.eq.s32.totalorder %s37, 1
      %p107 = por %p105, %p106
      %p108 = scmp.ne.s32.totalorder %s97, %s98
      %p109 = scmp.eq.s32.totalorder %s37, 0
      %p110 = por %p108, %p109
      %p111 = scmp.ne.s32.totalorder %s97, %s98
      %p112 = scmp.eq.s32.totalorder %s38, 1
      %p113 = por %p111, %p112
      %p115 = scmp.ne.s32.totalorder %s98, %s114
      %p116 = scmp.eq.s32.totalorder %s38, 0
      %p117 = por %p115, %p116
      %s118 = ssub.s32 %s32, %s39
      %p119 = scmp.eq.s32.totalorder %s118, 0
      %s121 = sadd.s32 %s120, 1
      %s122 = scalar_select %p119, %s120, %s121
      %p125 = pneg %p119
      %p126 = scmp.eq.s32.totalorder %s32, 1
      %p127 = por %p125, %p126
      %p128 = scmp.ne.s32.totalorder %s120, %s123
      %p129 = scmp.eq.s32.totalorder %s32, 0
      %p130 = por %p128, %p129
      %p131 = scmp.ne.s32.totalorder %s120, %s123
      %p132 = scmp.eq.s32.totalorder %s37, 1
      %p133 = por %p131, %p132
      %p134 = scmp.ne.s32.totalorder %s123, %s124
      %p135 = scmp.eq.s32.totalorder %s37, 0
      %p136 = por %p134, %p135
      %p137 = scmp.ne.s32.totalorder %s123, %s124
      %p138 = scmp.eq.s32.totalorder %s38, 1
      %p139 = por %p137, %p138
      %p141 = scmp.ne.s32.totalorder %s124, %s140
      %p142 = scmp.eq.s32.totalorder %s38, 0
      %p143 = por %p141, %p142
      %s145 = sadd.s32 %s144, 1
      %p148 = scmp.eq.s32.totalorder %s32, 1
      %p149 = scmp.ne.s32.totalorder %s144, %s146
      %p150 = scmp.eq.s32.totalorder %s32, 0
      %p151 = por %p149, %p150
      %p152 = scmp.ne.s32.totalorder %s144, %s146
      %p153 = scmp.eq.s32.totalorder %s37, 1
      %p154 = por %p152, %p153
      %p155 = scmp.ne.s32.totalorder %s146, %s147
      %p156 = scmp.eq.s32.totalorder %s37, 0
      %p157 = por %p155, %p156
      %p158 = scmp.ne.s32.totalorder %s146, %s147
      %p159 = scmp.eq.s32.totalorder %s38, 1
      %p160 = por %p158, %p159
      %p162 = scmp.ne.s32.totalorder %s147, %s161
      %p163 = scmp.eq.s32.totalorder %s38, 0
      %p164 = por %p162, %p163
      %s166 = sadd.s32 %s165, 1
      %p169 = scmp.eq.s32.totalorder %s32, 1
      %p170 = scmp.ne.s32.totalorder %s165, %s167
      %p171 = scmp.eq.s32.totalorder %s32, 0
      %p172 = por %p170, %p171
      %p173 = scmp.ne.s32.totalorder %s165, %s167
      %p174 = scmp.eq.s32.totalorder %s37, 1
      %p175 = por %p173, %p174
      %p176 = scmp.ne.s32.totalorder %s167, %s168
      %p177 = scmp.eq.s32.totalorder %s37, 0
      %p178 = por %p176, %p177
      %p179 = scmp.ne.s32.totalorder %s167, %s168
      %p180 = scmp.eq.s32.totalorder %s38, 1
      %p181 = por %p179, %p180
      %p183 = scmp.ne.s32.totalorder %s168, %s182
      %p184 = scmp.eq.s32.totalorder %s38, 0
      %p185 = por %p183, %p184
      %s187 = sadd.s32 %s186, 1
      %p190 = scmp.eq.s32.totalorder %s32, 1
      %p191 = scmp.ne.s32.totalorder %s186, %s188
      %p192 = scmp.eq.s32.totalorder %s32, 0
      %p193 = por %p191, %p192
      %p194 = scmp.ne.s32.totalorder %s186, %s188
      %p195 = scmp.eq.s32.totalorder %s37, 1
      %p196 = por %p194, %p195
      %p197 = scmp.ne.s32.totalorder %s188, %s189
      %p198 = scmp.eq.s32.totalorder %s37, 0
      %p199 = por %p197, %p198
      %p200 = scmp.ne.s32.totalorder %s188, %s189
      %p201 = scmp.eq.s32.totalorder %s38, 1
      %p202 = por %p200, %p201
      %p204 = scmp.ne.s32.totalorder %s189, %s203
      %p205 = scmp.eq.s32.totalorder %s38, 0
      %p206 = por %p204, %p205
      %s208 = sadd.s32 %s207, 1
      %p211 = scmp.eq.s32.totalorder %s32, 1
      %p212 = scmp.ne.s32.totalorder %s207, %s209
      %p213 = scmp.eq.s32.totalorder %s32, 0
      %p214 = por %p212, %p213
      %p215 = scmp.ne.s32.totalorder %s207, %s209
      %p216 = scmp.eq.s32.totalorder %s37, 1
      %p217 = por %p215, %p216
      %p218 = scmp.ne.s32.totalorder %s209, %s210
      %p219 = scmp.eq.s32.totalorder %s37, 0
      %p220 = por %p218, %p219
      %p221 = scmp.ne.s32.totalorder %s209, %s210
      %p222 = scmp.eq.s32.totalorder %s38, 1
      %p223 = por %p221, %p222
      %p225 = scmp.ne.s32.totalorder %s210, %s224
      %p226 = scmp.eq.s32.totalorder %s38, 0
      %p227 = por %p225, %p226
      %s229 = sadd.s32 %s228, 1
      %p232 = scmp.eq.s32.totalorder %s32, 1
      %p233 = scmp.ne.s32.totalorder %s228, %s230
      %p234 = scmp.eq.s32.totalorder %s32, 0
      %p235 = por %p233, %p234
      %p236 = scmp.ne.s32.totalorder %s228, %s230
      %p237 = scmp.eq.s32.totalorder %s37, 1
      %p238 = por %p236, %p237
      %p239 = scmp.ne.s32.totalorder %s230, %s231
      %p240 = scmp.eq.s32.totalorder %s37, 0
      %p241 = por %p239, %p240
      %p242 = scmp.ne.s32.totalorder %s230, %s231
      %p243 = scmp.eq.s32.totalorder %s38, 1
      %p244 = por %p242, %p243
      %p246 = scmp.ne.s32.totalorder %s231, %s245
      %p247 = scmp.eq.s32.totalorder %s38, 0
      %p248 = por %p246, %p247
      %s250 = sadd.s32 %s249, 1
      %p253 = scmp.eq.s32.totalorder %s32, 1
      %p254 = scmp.ne.s32.totalorder %s249, %s251
      %p255 = scmp.eq.s32.totalorder %s32, 0
      %p256 = por %p254, %p255
      %p257 = scmp.ne.s32.totalorder %s249, %s251
      %p258 = scmp.eq.s32.totalorder %s37, 1
      %p259 = por %p257, %p258
      %p260 = scmp.ne.s32.totalorder %s251, %s252
      %p261 = scmp.eq.s32.totalorder %s37, 0
      %p262 = por %p260, %p261
      %p263 = scmp.ne.s32.totalorder %s251, %s252
      %p264 = scmp.eq.s32.totalorder %s38, 1
      %p265 = por %p263, %p264
      %p267 = scmp.ne.s32.totalorder %s252, %s266
      %p268 = scmp.eq.s32.totalorder %s38, 0
      %p269 = por %p267, %p268
      %s271 = sadd.s32 %s270, 1
      %p274 = scmp.eq.s32.totalorder %s32, 1
      %p275 = scmp.ne.s32.totalorder %s270, %s272
      %p276 = scmp.eq.s32.totalorder %s32, 0
      %p277 = por %p275, %p276
      %p278 = scmp.ne.s32.totalorder %s270, %s272
      %p279 = scmp.eq.s32.totalorder %s37, 1
      %p280 = por %p278, %p279
      %p281 = scmp.ne.s32.totalorder %s272, %s273
      %p282 = scmp.eq.s32.totalorder %s37, 0
      %p283 = por %p281, %p282
      %p284 = scmp.ne.s32.totalorder %s272, %s273
      %p285 = scmp.eq.s32.totalorder %s38, 1
      %p286 = por %p284, %p285
      %p288 = scmp.ne.s32.totalorder %s273, %s287
      %p289 = scmp.eq.s32.totalorder %s38, 0
      %p290 = por %p288, %p289
      %s292 = sadd.s32 %s291, 1
      %p295 = scmp.eq.s32.totalorder %s32, 1
      %p296 = scmp.ne.s32.totalorder %s291, %s293
      %p297 = scmp.eq.s32.totalorder %s32, 0
      %p298 = por %p296, %p297
      %p299 = scmp.ne.s32.totalorder %s291, %s293
      %p300 = scmp.eq.s32.totalorder %s37, 1
      %p301 = por %p299, %p300
      %p302 = scmp.ne.s32.totalorder %s293, %s294
      %p303 = scmp.eq.s32.totalorder %s37, 0
      %p304 = por %p302, %p303
      %p305 = scmp.ne.s32.totalorder %s293, %s294
      %p306 = scmp.eq.s32.totalorder %s38, 1
      %p307 = por %p305, %p306
      %p309 = scmp.ne.s32.totalorder %s294, %s308
      %p310 = scmp.eq.s32.totalorder %s38, 0
      %p311 = por %p309, %p310
      %s313 = sadd.s32 %s312, 1
      %p316 = scmp.eq.s32.totalorder %s32, 1
      %p317 = scmp.ne.s32.totalorder %s312, %s314
      %p318 = scmp.eq.s32.totalorder %s32, 0
      %p319 = por %p317, %p318
      %p320 = scmp.ne.s32.totalorder %s312, %s314
      %p321 = scmp.eq.s32.totalorder %s37, 1
      %p322 = por %p320, %p321
      %p323 = scmp.ne.s32.totalorder %s314, %s315
      %p324 = scmp.eq.s32.totalorder %s37, 0
      %p325 = por %p323, %p324
      %p326 = scmp.ne.s32.totalorder %s314, %s315
      %p327 = scmp.eq.s32.totalorder %s38, 1
      %p328 = por %p326, %p327
      %p330 = scmp.ne.s32.totalorder %s315, %s329
      %p331 = scmp.eq.s32.totalorder %s38, 0
      %p332 = por %p330, %p331
      %s334 = sadd.s32 %s333, 1
      %p337 = scmp.eq.s32.totalorder %s32, 1
      %p338 = scmp.ne.s32.totalorder %s333, %s335
      %p339 = scmp.eq.s32.totalorder %s32, 0
      %p340 = por %p338, %p339
      %p341 = scmp.ne.s32.totalorder %s333, %s335
      %p342 = scmp.eq.s32.totalorder %s37, 1
      %p343 = por %p341, %p342
      %p344 = scmp.ne.s32.totalorder %s335, %s336
      %p345 = scmp.eq.s32.totalorder %s37, 0
      %p346 = por %p344, %p345
      %p347 = scmp.ne.s32.totalorder %s335, %s336
      %p348 = scmp.eq.s32.totalorder %s38, 1
      %p349 = por %p347, %p348
      %p351 = scmp.ne.s32.totalorder %s336, %s350
      %p352 = scmp.eq.s32.totalorder %s38, 0
      %p353 = por %p351, %p352
      %s355 = sadd.s32 %s354, 1
      %p358 = scmp.eq.s32.totalorder %s32, 1
      %p359 = scmp.ne.s32.totalorder %s354, %s356
      %p360 = scmp.eq.s32.totalorder %s32, 0
      %p361 = por %p359, %p360
      %p362 = scmp.ne.s32.totalorder %s354, %s356
      %p363 = scmp.eq.s32.totalorder %s37, 1
      %p364 = por %p362, %p363
      %p365 = scmp.ne.s32.totalorder %s356, %s357
      %p366 = scmp.eq.s32.totalorder %s37, 0
      %p367 = por %p365, %p366
      %p368 = scmp.ne.s32.totalorder %s356, %s357
      %p369 = scmp.eq.s32.totalorder %s38, 1
      %p370 = por %p368, %p369
      %p372 = scmp.ne.s32.totalorder %s357, %s371
      %p373 = scmp.eq.s32.totalorder %s38, 0
      %p374 = por %p372, %p373
      %s376 = sadd.s32 %s375, 1
      %p379 = scmp.eq.s32.totalorder %s32, 1
      %p380 = scmp.ne.s32.totalorder %s375, %s377
      %p381 = scmp.eq.s32.totalorder %s32, 0
      %p382 = por %p380, %p381
      %p383 = scmp.ne.s32.totalorder %s375, %s377
      %p384 = scmp.eq.s32.totalorder %s37, 1
      %p385 = por %p383, %p384
      %p386 = scmp.ne.s32.totalorder %s377, %s378
      %p387 = scmp.eq.s32.totalorder %s37, 0
      %p388 = por %p386, %p387
      %p389 = scmp.ne.s32.totalorder %s377, %s378
      %p390 = scmp.eq.s32.totalorder %s38, 1
      %p391 = por %p389, %p390
      %p393 = scmp.ne.s32.totalorder %s378, %s392
      %p394 = scmp.eq.s32.totalorder %s38, 0
      %p395 = por %p393, %p394
      %s397 = sadd.s32 %s396, 1
      %p400 = scmp.eq.s32.totalorder %s32, 1
      %p401 = scmp.ne.s32.totalorder %s396, %s398
      %p402 = scmp.eq.s32.totalorder %s32, 0
      %p403 = por %p401, %p402
      %p404 = scmp.ne.s32.totalorder %s396, %s398
      %p405 = scmp.eq.s32.totalorder %s37, 1
      %p406 = por %p404, %p405
      %p407 = scmp.ne.s32.totalorder %s398, %s399
      %p408 = scmp.eq.s32.totalorder %s37, 0
      %p409 = por %p407, %p408
      %p410 = scmp.ne.s32.totalorder %s398, %s399
      %p411 = scmp.eq.s32.totalorder %s38, 1
      %p412 = por %p410, %p411
      %p414 = scmp.ne.s32.totalorder %s399, %s413
      %p415 = scmp.eq.s32.totalorder %s38, 0
      %p416 = por %p414, %p415
      %s418 = sadd.s32 %s417, 1
      %p421 = scmp.eq.s32.totalorder %s32, 1
      %p422 = scmp.ne.s32.totalorder %s417, %s419
      %p423 = scmp.eq.s32.totalorder %s32, 0
      %p424 = por %p422, %p423
      %p425 = scmp.ne.s32.totalorder %s417, %s419
      %p426 = scmp.eq.s32.totalorder %s37, 1
      %p427 = por %p425, %p426
      %p428 = scmp.ne.s32.totalorder %s419, %s420
      %p429 = scmp.eq.s32.totalorder %s37, 0
      %p430 = por %p428, %p429
      %p431 = scmp.ne.s32.totalorder %s419, %s420
      %p432 = scmp.eq.s32.totalorder %s38, 1
      %p433 = por %p431, %p432
      %p435 = scmp.ne.s32.totalorder %s420, %s434
      %p436 = scmp.eq.s32.totalorder %s38, 0
      %p437 = por %p435, %p436
      %s438 = ssub.s32 %s32, %s39
      %p439 = scmp.eq.s32.totalorder %s438, 0
      %s441 = sadd.s32 %s440, 1
      %s442 = scalar_select %p439, %s440, %s441
      %p445 = pneg %p439
      %p446 = scmp.eq.s32.totalorder %s32, 1
      %p447 = por %p445, %p446
      %p448 = scmp.ne.s32.totalorder %s440, %s443
      %p449 = scmp.eq.s32.totalorder %s32, 0
      %p450 = por %p448, %p449
      %p451 = scmp.ne.s32.totalorder %s440, %s443
      %p452 = scmp.eq.s32.totalorder %s37, 1
      %p453 = por %p451, %p452
      %p454 = scmp.ne.s32.totalorder %s443, %s444
      %p455 = scmp.eq.s32.totalorder %s37, 0
      %p456 = por %p454, %p455
      %p457 = scmp.ne.s32.totalorder %s443, %s444
      %p458 = scmp.eq.s32.totalorder %s38, 1
      %p459 = por %p457, %p458
      %p461 = scmp.ne.s32.totalorder %s444, %s460
      %p462 = scmp.eq.s32.totalorder %s38, 0
      %p463 = por %p461, %p462
      %s464 = ssub.s32 %s32, %s39
      %p465 = scmp.eq.s32.totalorder %s464, 0
      %s467 = sadd.s32 %s466, 1
      %s468 = scalar_select %p465, %s466, %s467
      %p471 = pneg %p465
      %p472 = scmp.eq.s32.totalorder %s32, 1
      %p473 = por %p471, %p472
      %p474 = scmp.ne.s32.totalorder %s466, %s469
      %p475 = scmp.eq.s32.totalorder %s32, 0
      %p476 = por %p474, %p475
      %p477 = scmp.ne.s32.totalorder %s466, %s469
      %p478 = scmp.eq.s32.totalorder %s37, 1
      %p479 = por %p477, %p478
      %p480 = scmp.ne.s32.totalorder %s469, %s470
      %p481 = scmp.eq.s32.totalorder %s37, 0
      %p482 = por %p480, %p481
      %p483 = scmp.ne.s32.totalorder %s469, %s470
      %p484 = scmp.eq.s32.totalorder %s38, 1
      %p485 = por %p483, %p484
      %p487 = scmp.ne.s32.totalorder %s470, %s486
      %p488 = scmp.eq.s32.totalorder %s38, 0
      %p489 = por %p487, %p488
      %p490 = scmp.le.s32.totalorder 1, %s32
      %p491 = scmp.lt.s32.totalorder %s32, 3
      %p492 = pnand %p490, %p491
      %p493 = pneg %p492
      // Predicated region
      $region9: #{decoder_forward.1} parent=5 // pred_check
        _
      $region10: #{decoder_forward.1} parent=5 // pred_check_branch
        %495 = sbr.rel (%p492) target = $region12
      $region11: #{decoder_forward.1} parent=5 // pred_region
        %s496 = ssub.s32 %s32, 1
        // Predicated region
        $region13: #{decoder_forward.1} parent=11 // pred_check
          %p497 = pneg %p157
        $region14: #{decoder_forward.1} parent=11 // pred_check_branch
          %499 = sbr.rel (%p497) target = $region16
        $region15: #{decoder_forward.1} parent=11 // pred_region
          _
        $region16: #{decoder_forward.1} parent=11 // pred_fallthru
          _
        // Predicated region
        $region17: #{decoder_forward.1} parent=11 // pred_check
          %p500 = pneg %p178
        $region18: #{decoder_forward.1} parent=11 // pred_check_branch
          %502 = sbr.rel (%p500) target = $region20
        $region19: #{decoder_forward.1} parent=11 // pred_region
          _
        $region20: #{decoder_forward.1} parent=11 // pred_fallthru
          _
        // Predicated region
        $region21: #{decoder_forward.1} parent=11 // pred_check
          %p503 = pneg %p199
        $region22: #{decoder_forward.1} parent=11 // pred_check_branch
          %505 = sbr.rel (%p503) target = $region24
        $region23: #{decoder_forward.1} parent=11 // pred_region
          _
        $region24: #{decoder_forward.1} parent=11 // pred_fallthru
          _
        // Predicated region
        $region25: #{decoder_forward.1} parent=11 // pred_check
          %p506 = pneg %p220
        $region26: #{decoder_forward.1} parent=11 // pred_check_branch
          %508 = sbr.rel (%p506) target = $region28
        $region27: #{decoder_forward.1} parent=11 // pred_region
          _
        $region28: #{decoder_forward.1} parent=11 // pred_fallthru
          _
        // Predicated region
        $region29: #{decoder_forward.1} parent=11 // pred_check
          %p509 = pneg %p241
        $region30: #{decoder_forward.1} parent=11 // pred_check_branch
          %511 = sbr.rel (%p509) target = $region32
        $region31: #{decoder_forward.1} parent=11 // pred_region
          _
        $region32: #{decoder_forward.1} parent=11 // pred_fallthru
          _
        // Predicated region
        $region33: #{decoder_forward.1} parent=11 // pred_check
          %p512 = pneg %p262
        $region34: #{decoder_forward.1} parent=11 // pred_check_branch
          %514 = sbr.rel (%p512) target = $region36
        $region35: #{decoder_forward.1} parent=11 // pred_region
          _
        $region36: #{decoder_forward.1} parent=11 // pred_fallthru
          _
        // Predicated region
        $region37: #{decoder_forward.1} parent=11 // pred_check
          %p515 = pneg %p283
        $region38: #{decoder_forward.1} parent=11 // pred_check_branch
          %517 = sbr.rel (%p515) target = $region40
        $region39: #{decoder_forward.1} parent=11 // pred_region
          _
        $region40: #{decoder_forward.1} parent=11 // pred_fallthru
          _
        // Predicated region
        $region41: #{decoder_forward.1} parent=11 // pred_check
          %p518 = pneg %p304
        $region42: #{decoder_forward.1} parent=11 // pred_check_branch
          %520 = sbr.rel (%p518) target = $region44
        $region43: #{decoder_forward.1} parent=11 // pred_region
          _
        $region44: #{decoder_forward.1} parent=11 // pred_fallthru
          _
        // Predicated region
        $region45: #{decoder_forward.1} parent=11 // pred_check
          %p521 = pneg %p325
        $region46: #{decoder_forward.1} parent=11 // pred_check_branch
          %523 = sbr.rel (%p521) target = $region48
        $region47: #{decoder_forward.1} parent=11 // pred_region
          _
        $region48: #{decoder_forward.1} parent=11 // pred_fallthru
          _
        // Predicated region
        $region49: #{decoder_forward.1} parent=11 // pred_check
          %p524 = pneg %p346
        $region50: #{decoder_forward.1} parent=11 // pred_check_branch
          %526 = sbr.rel (%p524) target = $region52
        $region51: #{decoder_forward.1} parent=11 // pred_region
          _
        $region52: #{decoder_forward.1} parent=11 // pred_fallthru
          _
        // Predicated region
        $region53: #{decoder_forward.1} parent=11 // pred_check
          %p527 = pneg %p367
        $region54: #{decoder_forward.1} parent=11 // pred_check_branch
          %529 = sbr.rel (%p527) target = $region56
        $region55: #{decoder_forward.1} parent=11 // pred_region
          _
        $region56: #{decoder_forward.1} parent=11 // pred_fallthru
          _
        // Predicated region
        $region57: #{decoder_forward.1} parent=11 // pred_check
          %p530 = pneg %p388
        $region58: #{decoder_forward.1} parent=11 // pred_check_branch
          %532 = sbr.rel (%p530) target = $region60
        $region59: #{decoder_forward.1} parent=11 // pred_region
          _
        $region60: #{decoder_forward.1} parent=11 // pred_fallthru
          _
        // Predicated region
        $region61: #{decoder_forward.1} parent=11 // pred_check
          %p533 = pneg %p409
        $region62: #{decoder_forward.1} parent=11 // pred_check_branch
          %535 = sbr.rel (%p533) target = $region64
        $region63: #{decoder_forward.1} parent=11 // pred_region
          _
        $region64: #{decoder_forward.1} parent=11 // pred_fallthru
          _
        // Predicated region
        $region65: #{decoder_forward.1} parent=11 // pred_check
          %p536 = pneg %p430
        $region66: #{decoder_forward.1} parent=11 // pred_check_branch
          %538 = sbr.rel (%p536) target = $region68
        $region67: #{decoder_forward.1} parent=11 // pred_region
          _
        $region68: #{decoder_forward.1} parent=11 // pred_fallthru
          _
      $region12: #{decoder_forward.1} parent=5 // pred_fallthru
        _
      %p539 = scmp.lt.s32.totalorder %s32, 2
      // Predicated region
      $region69: #{decoder_forward.1} parent=5 // pred_check
        %p540 = pneg %p539
      $region70: #{decoder_forward.1} parent=5 // pred_check_branch
        %542 = sbr.rel (%p540) target = $region72
      $region71: #{decoder_forward.1} parent=5 // pred_region
        // Predicated region
        $region73: #{decoder_forward.1} parent=71 // pred_check
          %p543 = pneg %p52
        $region74: #{decoder_forward.1} parent=71 // pred_check_branch
          %545 = sbr.rel (%p543) target = $region76
        $region75: #{decoder_forward.1} parent=71 // pred_region
          %p546 = scmp.lt.s32.totalorder %s32, 1
          %s547 = scalar_select %p546, %s32, 1
          %s548 = smul.addr %s547, 8
          %s549 = scalar_lea.vmem %s0, %s548
        $region76: #{decoder_forward.1} parent=71 // pred_fallthru
          _
        // Predicated region
        $region77: #{decoder_forward.1} parent=71 // pred_check
          %p550 = pneg %p78
        $region78: #{decoder_forward.1} parent=71 // pred_check_branch
          %552 = sbr.rel (%p550) target = $region80
        $region79: #{decoder_forward.1} parent=71 // pred_region
          %p553 = scmp.lt.s32.totalorder %s32, 1
          %s554 = scalar_select %p553, %s32, 1
          %s555 = smul.addr %s554, 8
          %s556 = scalar_lea.vmem %s1, %s555
        $region80: #{decoder_forward.1} parent=71 // pred_fallthru
          _
        // Predicated region
        $region81: #{decoder_forward.1} parent=71 // pred_check
          %p557 = pneg %p104
        $region82: #{decoder_forward.1} parent=71 // pred_check_branch
          %559 = sbr.rel (%p557) target = $region84
        $region83: #{decoder_forward.1} parent=71 // pred_region
          %p560 = scmp.lt.s32.totalorder %s32, 1
          %s561 = scalar_select %p560, %s32, 1
          %s562 = smul.addr %s561, 4
          %s563 = smul.addr %s562, 8
          %s564 = scalar_lea.vmem %s2, %s563
        $region84: #{decoder_forward.1} parent=71 // pred_fallthru
          _
        // Predicated region
        $region85: #{decoder_forward.1} parent=71 // pred_check
          %p565 = pneg %p130
        $region86: #{decoder_forward.1} parent=71 // pred_check_branch
          %567 = sbr.rel (%p565) target = $region88
        $region87: #{decoder_forward.1} parent=71 // pred_region
          %p568 = scmp.lt.s32.totalorder %s32, 1
          %s569 = scalar_select %p568, %s32, 1
          %s570 = smul.addr %s569, 8
          %s571 = scalar_lea.vmem %s3, %s570
        $region88: #{decoder_forward.1} parent=71 // pred_fallthru
          _
      $region72: #{decoder_forward.1} parent=5 // pred_fallthru
        _
      %p572 = scmp.le.s32.totalorder 1, %s32
      %p573 = scmp.lt.s32.totalorder %s32, 3
      %p574 = pnand %p572, %p573
      %p575 = pneg %p574
      // Predicated region
      $region89: #{decoder_forward.1} parent=5 // pred_check
        _
      $region90: #{decoder_forward.1} parent=5 // pred_check_branch
        %577 = sbr.rel (%p574) target = $region92
      $region91: #{decoder_forward.1} parent=5 // pred_region
        %s578 = ssub.s32 %s32, 1
        %p579 = scmp.lt.s32.totalorder %s37, 1
        %s580 = scalar_select %p579, %s37, 1
        %s581 = smul.addr %s580, 8
        %s582 = scalar_lea.vmem %s0, %s581
        %p583 = pneg %p58
        %p584 = pneg %p55
        %p585 = scmp.lt.s32.totalorder %s37, 1
        %s586 = scalar_select %p585, %s37, 1
        %s587 = smul.addr %s586, 8
        %s588 = scalar_lea.vmem %s1, %s587
        %p589 = pneg %p84
        %p590 = pneg %p81
        %p591 = scmp.lt.s32.totalorder %s37, 1
        %s592 = scalar_select %p591, %s37, 1
        %s593 = smul.addr %s592, 4
        %s594 = smul.addr %s593, 8
        %s595 = scalar_lea.vmem %s2, %s594
        %p596 = pneg %p110
        %p597 = pneg %p107
        %p598 = scmp.lt.s32.totalorder %s37, 1
        %s599 = scalar_select %p598, %s37, 1
        %s600 = smul.addr %s599, 8
        %s601 = scalar_lea.vmem %s3, %s600
        %p602 = pneg %p136
        %p603 = pneg %p133
        %p604 = pneg %p157
        %p605 = pneg %p154
        %p606 = pneg %p178
        %p607 = pneg %p175
        %p608 = pneg %p199
        %p609 = pneg %p196
        %p610 = pneg %p220
        %p611 = pneg %p217
        %p612 = pneg %p241
        %p613 = pneg %p238
        %p614 = pneg %p262
        %p615 = pneg %p259
        %p616 = pneg %p283
        %p617 = pneg %p280
        %p618 = pneg %p304
        %p619 = pneg %p301
        %p620 = pneg %p325
        %p621 = pneg %p322
        %p622 = pneg %p346
        %p623 = pneg %p343
        %p624 = pneg %p367
        %p625 = pneg %p364
        %p626 = pneg %p388
        %p627 = pneg %p385
        %p628 = pneg %p409
        %p629 = pneg %p406
        %p630 = pneg %p430
        %p631 = pneg %p427
        %p632 = pneg %p456
        %p633 = pneg %p453
        %s634 = sand.u32 %s443, 1
        %s635 = scalar_lea.sflag [#allocation3], %s634
        %s636 = sand.u32 %s443, 1
        %s637 = smul.addr %s636, 8
        %s638 = scalar_lea.vmem [#allocation2], %s637
        %p639 = pneg %p482
        %p640 = pneg %p479
        %s641 = sand.u32 %s469, 1
        %s642 = scalar_lea.sflag [#allocation5], %s641
        %s643 = sand.u32 %s469, 1
        %s644 = smul.addr %s643, 8
        %s645 = scalar_lea.vmem [#allocation4], %s644
        %p646 = scmp.lt.s32.totalorder %s37, 1
        %s647 = scalar_select %p646, %s37, 1
        %s648 = smul.addr %s647, 8
        %s649 = scalar_lea.vmem %s0, %s648
        %p650 = scmp.lt.s32.totalorder %s37, 1
        %s651 = scalar_select %p650, %s37, 1
        %s652 = smul.addr %s651, 8
        %s653 = scalar_lea.vmem %s1, %s652
        %p654 = scmp.lt.s32.totalorder %s37, 1
        %s655 = scalar_select %p654, %s37, 1
        %s656 = smul.addr %s655, 4
        %s657 = smul.addr %s656, 8
        %s658 = scalar_lea.vmem %s2, %s657
        %p659 = scmp.lt.s32.totalorder %s37, 1
        %s660 = scalar_select %p659, %s37, 1
        %s661 = smul.addr %s660, 8
        %s662 = scalar_lea.vmem %s3, %s661
        %v664 = vld [vmem:[%s649] sm:$0xff]
        %v665 = vld [vmem:[%s653] sm:$0xff]
        %v666 = vld [vmem:[%s658] sm:$0xff]
        %v667 = vld [vmem:[%s658 + $0x8] sm:$0xff]
        %v668 = vld [vmem:[%s658 + $0x10] sm:$0xff]
        %v669 = vld [vmem:[%s658 + $0x18] sm:$0xff]
        %v670 = vld [vmem:[%s662] sm:$0xff]
        %v671 = vld [vmem:[%s4] sm:$0xff]
        %v672 = vld [vmem:[%s5] sm:$0x1]
        %v673 = vlaneseq
        %v674 = vshrl.u32 %v673, 7
        %v675 = vlaneseq
        %v676 = vand.u32 %v675, 127
        %vm677 = vcmp.ge.s32.totalorder %v674, 1
        %vm678 = vcmp.ge.s32.totalorder %v676, 1
        %vm679 = vmand %vm677, %vm678
        %vm680 = vcmp.eq.s32.totalorder %v674, 0
        %vm681 = vcmp.eq.s32.totalorder %v676, 0
        %vm682 = vmand %vm680, %vm681
        %v684 = vperm.slane %v672, 0
        %v686 = vadd.f32 %v665, %v671
        %v687 = vld [vmem:[%s6] sm:$0xf]
        %v688 = vld [vmem:[%s6 + $0x4] sm:$0xf]
        %v689 = vld [vmem:[%s6 + $0x8] sm:$0xf]
        %v690 = vld [vmem:[%s6 + $0xc] sm:$0xf]
        %v691 = vpack.c.bf16 %v686, %v686
        %v692 = vld [vmem:[%s7] sm:$0x1]
        %v694 = vperm.slane %v692, 0
        %v700 = vunpack.c.l.b16 %v687
        %v701 = vunpack.c.l.b16 %v688
        %v702 = vunpack.c.l.b16 %v689
        %v703 = vunpack.c.l.b16 %v690
        %v704 = vpack.c.b16 %v701, %v700
        %v705 = vpack.c.b16 %v703, %v702
        %vm708 = vcmask 261120
        %v710 = vsel %vm708, %v691, 0
        %712 = vmatpush.bf16.msra.mxu0 0
        %713 = vmatpush.bf16.msra.mxu0 0
        %714 = vmatpush.bf16.msra.mxu0 0
        %715 = vmatpush.bf16.msra.mxu0 0
        %716 = vmatpush.bf16.msra.mxu0 0
        %717 = vmatpush.bf16.msra.mxu0 0
        %718 = vmatpush.bf16.msra.mxu0 %v705
        %719 = vmatpush.bf16.msra.mxu0 %v704
        %720 = vmatmul.bf16.gmra.mxu0 %v710
        %v721 = vpop.f32.mrf.mxu0
        %v722 = vadd.f32 %v694, %v721
        %v723 = vpop.f32.mrf.mxu0
        %724 = vdwg.mxu0
        %v725 = vtanh.pop %v722
        %v727 = vrot.slane %v725, 6
        %vm729 = vcmask 1041408
        %v730 = vsel %vm729, %v684, %v727
        %v731 = vrot.slane %v725, 7
        %vm733 = vcmask 1040384
        %v734 = vsel %vm733, %v672, %v731
        %736 = vrot.lane.b32.xlu0 %v734, 32
        %v737 = vpop.permute.xlu0 %736
        %739 = vrot.lane.b32.xlu0 %v725, 64
        %v740 = vpop.permute.xlu0 %739
        %v742 = vsel %vm708, %v730, %v737
        %vm743 = vcmask 523264
        %v744 = vsel %vm743, %v742, %v740
        %v745 = vpack.c.bf16 %v744, %v744
        %v746 = vld [vmem:[%s14] sm:$0xf]
        %v747 = vld [vmem:[%s14 + $0x4] sm:$0xf]
        %v748 = vld [vmem:[%s14 + $0x8] sm:$0xf]
        %v749 = vld [vmem:[%s14 + $0xc] sm:$0xf]
        %v750 = vld [vmem:[%s14 + $0x10] sm:$0xf]
        %v751 = vld [vmem:[%s14 + $0x14] sm:$0xf]
        %v752 = vld [vmem:[%s14 + $0x18] sm:$0xf]
        %v753 = vld [vmem:[%s14 + $0x1c] sm:$0xf]
        %v754 = vld [vmem:[%s14 + $0x20] sm:$0xf]
        %v755 = vld [vmem:[%s14 + $0x24] sm:$0xf]
        %v756 = vld [vmem:[%s14 + $0x28] sm:$0xf]
        %v757 = vld [vmem:[%s14 + $0x2c] sm:$0xf]
        %v758 = vld [vmem:[%s16] sm:$0x1]
        %v760 = vperm.slane %v758, 0
        %v774 = vunpack.c.l.b16 %v746
        %v775 = vunpack.c.l.b16 %v747
        %v776 = vunpack.c.l.b16 %v748
        %v777 = vunpack.c.l.b16 %v749
        %v778 = vunpack.c.l.b16 %v750
        %v779 = vunpack.c.l.b16 %v751
        %v780 = vunpack.c.l.b16 %v752
        %v781 = vunpack.c.l.b16 %v753
        %v782 = vunpack.c.l.b16 %v754
        %v783 = vunpack.c.l.b16 %v755
        %v784 = vunpack.c.l.b16 %v756
        %v785 = vunpack.c.l.b16 %v757
        %v786 = vpack.c.b16 %v775, %v774
        %v787 = vpack.c.b16 %v777, %v776
        %v788 = vpack.c.b16 %v779, %v778
        %v789 = vpack.c.b16 %v781, %v780
        %v790 = vpack.c.b16 %v783, %v782
        %v791 = vpack.c.b16 %v785, %v784
        %vm798 = vcmask 785408
        %v800 = vsel %vm798, %v745, 0
        %802 = vmatpush.bf16.msra.mxu0 0
        %803 = vmatpush.bf16.msra.mxu0 0
        %804 = vmatpush.bf16.msra.mxu0 %v791
        %805 = vmatpush.bf16.msra.mxu0 %v790
        %806 = vmatpush.bf16.msra.mxu0 %v789
        %807 = vmatpush.bf16.msra.mxu0 %v788
        %808 = vmatpush.bf16.msra.mxu0 %v787
        %809 = vmatpush.bf16.msra.mxu0 %v786
        %810 = vmatmul.bf16.gmra.mxu0 %v800
        %v811 = vpop.f32.mrf.mxu0
        %v812 = vadd.f32 %v760, %v811
        %v813 = vpop.f32.mrf.mxu0
        %814 = vdwg.mxu0
        %v815 = vld [vmem:[%s15] sm:$0xf]
        %v816 = vld [vmem:[%s15 + $0x4] sm:$0xf]
        %v817 = vld [vmem:[%s15 + $0x8] sm:$0xf]
        %v818 = vld [vmem:[%s15 + $0xc] sm:$0xf]
        %v819 = vld [vmem:[%s15 + $0x10] sm:$0xf]
        %v820 = vld [vmem:[%s15 + $0x14] sm:$0xf]
        %v821 = vld [vmem:[%s15 + $0x18] sm:$0xf]
        %v822 = vld [vmem:[%s15 + $0x1c] sm:$0xf]
        %v823 = vld [vmem:[%s15 + $0x20] sm:$0xf]
        %v824 = vld [vmem:[%s15 + $0x24] sm:$0xf]
        %v825 = vld [vmem:[%s15 + $0x28] sm:$0xf]
        %v826 = vld [vmem:[%s15 + $0x2c] sm:$0xf]
        %v827 = vld [vmem:[%s17] sm:$0x1]
        %v829 = vperm.slane %v827, 0
        %v843 = vunpack.c.l.b16 %v815
        %v844 = vunpack.c.l.b16 %v816
        %v845 = vunpack.c.l.b16 %v817
        %v846 = vunpack.c.l.b16 %v818
        %v847 = vunpack.c.l.b16 %v819
        %v848 = vunpack.c.l.b16 %v820
        %v849 = vunpack.c.l.b16 %v821
        %v850 = vunpack.c.l.b16 %v822
        %v851 = vunpack.c.l.b16 %v823
        %v852 = vunpack.c.l.b16 %v824
        %v853 = vunpack.c.l.b16 %v825
        %v854 = vunpack.c.l.b16 %v826
        %v855 = vpack.c.b16 %v844, %v843
        %v856 = vpack.c.b16 %v846, %v845
        %v857 = vpack.c.b16 %v848, %v847
        %v858 = vpack.c.b16 %v850, %v849
        %v859 = vpack.c.b16 %v852, %v851
        %v860 = vpack.c.b16 %v854, %v853
        %867 = vmatpush.bf16.msra.mxu0 0
        %868 = vmatpush.bf16.msra.mxu0 0
        %869 = vmatpush.bf16.msra.mxu0 %v860
        %870 = vmatpush.bf16.msra.mxu0 %v859
        %871 = vmatpush.bf16.msra.mxu0 %v858
        %872 = vmatpush.bf16.msra.mxu0 %v857
        %873 = vmatpush.bf16.msra.mxu0 %v856
        %874 = vmatpush.bf16.msra.mxu0 %v855
        %875 = vmatmul.bf16.gmra.mxu0 %v800
        %v876 = vpop.f32.mrf.mxu0
        %v877 = vadd.f32 %v829, %v876
        %v878 = vpop.f32.mrf.mxu0
        %879 = vdwg.mxu0
        %v880 = vsub.f32 0.0, %v877
        %v881 = vmul.f32 %v880, 1.442695
        %v882 = vpow.pop %v881
        %v883 = vadd.f32 %v882, 1.0
        %v884 = vrcp.pop %v883
        %v885 = vmul.f32 %v812, %v884
        %v886 = vld [vmem:[%s8] sm:$0xf]
        %v887 = vld [vmem:[%s8 + $0x4] sm:$0xf]
        %v888 = vld [vmem:[%s8 + $0x8] sm:$0xf]
        %v889 = vld [vmem:[%s8 + $0xc] sm:$0xf]
        %v890 = vpack.c.bf16 %v885, %v885
        %v891 = vld [vmem:[%s9] sm:$0x1]
        %v893 = vperm.slane %v891, 0
        %v899 = vunpack.c.l.b16 %v886
        %v900 = vunpack.c.l.b16 %v887
        %v901 = vunpack.c.l.b16 %v888
        %v902 = vunpack.c.l.b16 %v889
        %v903 = vpack.c.b16 %v900, %v899
        %v904 = vpack.c.b16 %v902, %v901
        %v908 = vsel %vm708, %v890, 0
        %910 = vmatpush.bf16.msra.mxu0 0
        %911 = vmatpush.bf16.msra.mxu0 0
        %912 = vmatpush.bf16.msra.mxu0 0
        %913 = vmatpush.bf16.msra.mxu0 0
        %914 = vmatpush.bf16.msra.mxu0 0
        %915 = vmatpush.bf16.msra.mxu0 0
        %916 = vmatpush.bf16.msra.mxu0 %v904
        %917 = vmatpush.bf16.msra.mxu0 %v903
        %918 = vmatmul.bf16.gmra.mxu0 %v908
        %v919 = vpop.f32.mrf.mxu0
        %v920 = vadd.f32 %v893, %v919
        %v921 = vpop.f32.mrf.mxu0
        %922 = vdwg.mxu0
        %v923 = vtanh.pop %v920
        %v925 = vsel %vm708, %v923, 0
        %927 = vmatpush.msra.mxu0 0.0
        %928 = vmatpush.msra.mxu0 0.0
        %929 = vmatpush.msra.mxu0 0.0
        %930 = vmatpush.msra.mxu0 0.0
        %931 = vmatpush.msra.mxu0 0.0
        %932 = vmatpush.msra.mxu0 0.0
        %933 = vmatpush.msra.mxu0 0.0
        %934 = vmatpush.msra.mxu0 0.0
        %935 = vmatpush.msra.mxu0 0.0
        %936 = vmatpush.msra.mxu0 0.0
        %937 = vmatpush.msra.mxu0 0.0
        %938 = vmatpush.msra.mxu0 0.0
        %939 = vmatpush.msra.mxu0 %v669
        %940 = vmatpush.msra.mxu0 %v668
        %941 = vmatpush.msra.mxu0 %v667
        %942 = vmatpush.msra.mxu0 %v666
        %943 = vmatmul.f32.gmra.mxu0 %v925
        %v944 = vpop.f32.mrf.mxu0
        %v945 = vadd.f32 0.0, %v944
        %946 = vdwg.mxu0
        %vm947 = vcmask 64512
        %v948 = vsel %vm947, %v945, -inf
        %949 = vmax.xlane.f32.xlu0 %v948
        %v950 = vpop.xlane.xlu0 %949
        %v951 = vsub.f32 %v945, %v950
        %v952 = vmul.f32 %v951, 1.442695
        %v953 = vpow.pop %v952
        %v954 = vsel %vm947, %v953, 0.0
        %955 = vadd.xlane.f32.xlu0 %v954
        %v956 = vpop.xlane.xlu0 %955
        %v957 = vrcp.pop %v956
        %v958 = vmul.f32 %v953, %v957
        %v960 = vrot.slane %v958, 7
        %v962 = vsel %vm733, 0.0, %v960
        %v963 = vadd.f32 %v958, %v962
        %965 = vrot.lane.b32.xlu0 %v963, 1
        %v966 = vpop.permute.xlu0 %965
        %vm968 = vcmask 7168
        %v969 = vsel %vm968, 0.0, %v966
        %v970 = vadd.f32 %v962, %v969
        %v971 = vmul.f32 %v958, %v970
        %v972 = vsel %vm679, %v971, 0.0
        %v973 = vsel %vm682, %v958, %v972
        %v974 = vsel %vm947, %v973, -inf
        %975 = vmax.xlane.f32.xlu0 %v974
        %v976 = vpop.xlane.xlu0 %975
        %v977 = vsub.f32 %v973, %v976
        %v978 = vmul.f32 %v977, 1.442695
        %v979 = vpow.pop %v978
        %v980 = vsel %vm947, %v979, 0.0
        %981 = vadd.xlane.f32.xlu0 %v980
        %v982 = vpop.xlane.xlu0 %981
        %v983 = vrcp.pop %v982
        %v984 = vmul.f32 %v979, %v983
        %v986 = vsel %vm947, %v984, 0
        %988 = vmatpush.msra.mxu0 0.0
        %989 = vmatpush.msra.mxu0 0.0
        %990 = vmatpush.msra.mxu0 0.0
        %991 = vmatpush.msra.mxu0 0.0
        %992 = vmatpush.msra.mxu0 0.0
        %993 = vmatpush.msra.mxu0 0.0
        %994 = vmatpush.msra.mxu0 0.0
        %995 = vmatpush.msra.mxu0 0.0
        %996 = vmatpush.msra.mxu0 0.0
        %997 = vmatpush.msra.mxu0 0.0
        %998 = vmatpush.msra.mxu0 0.0
        %999 = vmatpush.msra.mxu0 0.0
        %1000 = vmatpush.msra.mxu0 0.0
        %1001 = vmatpush.msra.mxu0 0.0
        %1002 = vmatpush.msra.mxu0 0.0
        %1003 = vmatpush.msra.mxu0 %v670
        %1004 = vmatmul.f32.gmra.mxu0 %v986
        %v1005 = vpop.f32.mrf.mxu0
        %v1006 = vadd.f32 0.0, %v1005
        %1007 = vdwg.mxu0
        %v1008 = vld [vmem:[%s10] sm:$0xf]
        %v1009 = vld [vmem:[%s10 + $0x4] sm:$0xf]
        %v1010 = vld [vmem:[%s10 + $0x8] sm:$0xf]
        %v1011 = vld [vmem:[%s10 + $0xc] sm:$0xf]
        %v1012 = vpack.c.bf16 %v1006, %v1006
        %v1013 = vld [vmem:[%s11] sm:$0x1]
        %v1015 = vperm.slane %v1013, 0
        %v1021 = vunpack.c.l.b16 %v1008
        %v1022 = vunpack.c.l.b16 %v1009
        %v1023 = vunpack.c.l.b16 %v1010
        %v1024 = vunpack.c.l.b16 %v1011
        %v1025 = vpack.c.b16 %v1022, %v1021
        %v1026 = vpack.c.b16 %v1024, %v1023
        %v1030 = vsel %vm708, %v1012, 0
        %1032 = vmatpush.bf16.msra.mxu0 0
        %1033 = vmatpush.bf16.msra.mxu0 0
        %1034 = vmatpush.bf16.msra.mxu0 0
        %1035 = vmatpush.bf16.msra.mxu0 0
        %1036 = vmatpush.bf16.msra.mxu0 0
        %1037 = vmatpush.bf16.msra.mxu0 0
        %1038 = vmatpush.bf16.msra.mxu0 %v1026
        %1039 = vmatpush.bf16.msra.mxu0 %v1025
        %1040 = vmatmul.bf16.gmra.mxu0 %v1030
        %v1041 = vpop.f32.mrf.mxu0
        %v1042 = vadd.f32 %v1015, %v1041
        %v1043 = vpop.f32.mrf.mxu0
        %1044 = vdwg.mxu0
        %v1045 = vtanh.pop %v1042
        %v1046 = vadd.f32 %v885, %v1045
        %v1047 = vmul.f32 %v1046, 0.70710677
        %v1048 = vadd.f32 %v1047, %v725
        %v1049 = vmul.f32 %v1048, 0.70710677
        %v1051 = vrot.slane %v1049, 6
        %v1053 = vsel %vm729, %v684, %v1051
        %v1054 = vrot.slane %v1049, 7
        %v1056 = vsel %vm733, %v672, %v1054
        %1058 = vrot.lane.b32.xlu0 %v1056, 32
        %v1059 = vpop.permute.xlu0 %1058
        %1061 = vrot.lane.b32.xlu0 %v1049, 64
        %v1062 = vpop.permute.xlu0 %1061
        %v1064 = vsel %vm708, %v1053, %v1059
        %v1065 = vsel %vm743, %v1064, %v1062
        %v1066 = vpack.c.bf16 %v1065, %v1065
        %s1067 = scalar_lea.vmem %s14, 48
        %v1068 = vld [vmem:[%s1067] sm:$0xf]
        %v1069 = vld [vmem:[%s1067 + $0x4] sm:$0xf]
        %v1070 = vld [vmem:[%s1067 + $0x8] sm:$0xf]
        %v1071 = vld [vmem:[%s1067 + $0xc] sm:$0xf]
        %v1072 = vld [vmem:[%s1067 + $0x10] sm:$0xf]
        %v1073 = vld [vmem:[%s1067 + $0x14] sm:$0xf]
        %v1074 = vld [vmem:[%s1067 + $0x18] sm:$0xf]
        %v1075 = vld [vmem:[%s1067 + $0x1c] sm:$0xf]
        %v1076 = vld [vmem:[%s1067 + $0x20] sm:$0xf]
        %v1077 = vld [vmem:[%s1067 + $0x24] sm:$0xf]
        %v1078 = vld [vmem:[%s1067 + $0x28] sm:$0xf]
        %v1079 = vld [vmem:[%s1067 + $0x2c] sm:$0xf]
        %s1080 = scalar_lea.vmem %s16, 1
        %v1081 = vld [vmem:[%s1080] sm:$0x1]
        %v1083 = vperm.slane %v1081, 0
        %v1097 = vunpack.c.l.b16 %v1068
        %v1098 = vunpack.c.l.b16 %v1069
        %v1099 = vunpack.c.l.b16 %v1070
        %v1100 = vunpack.c.l.b16 %v1071
        %v1101 = vunpack.c.l.b16 %v1072
        %v1102 = vunpack.c.l.b16 %v1073
        %v1103 = vunpack.c.l.b16 %v1074
        %v1104 = vunpack.c.l.b16 %v1075
        %v1105 = vunpack.c.l.b16 %v1076
        %v1106 = vunpack.c.l.b16 %v1077
        %v1107 = vunpack.c.l.b16 %v1078
        %v1108 = vunpack.c.l.b16 %v1079
        %v1109 = vpack.c.b16 %v1098, %v1097
        %v1110 = vpack.c.b16 %v1100, %v1099
        %v1111 = vpack.c.b16 %v1102, %v1101
        %v1112 = vpack.c.b16 %v1104, %v1103
        %v1113 = vpack.c.b16 %v1106, %v1105
        %v1114 = vpack.c.b16 %v1108, %v1107
        %v1122 = vsel %vm798, %v1066, 0
        %1124 = vmatpush.bf16.msra.mxu0 0
        %1125 = vmatpush.bf16.msra.mxu0 0
        %1126 = vmatpush.bf16.msra.mxu0 %v1114
        %1127 = vmatpush.bf16.msra.mxu0 %v1113
        %1128 = vmatpush.bf16.msra.mxu0 %v1112
        %1129 = vmatpush.bf16.msra.mxu0 %v1111
        %1130 = vmatpush.bf16.msra.mxu0 %v1110
        %1131 = vmatpush.bf16.msra.mxu0 %v1109
        %1132 = vmatmul.bf16.gmra.mxu0 %v1122
        %v1133 = vpop.f32.mrf.mxu0
        %v1134 = vadd.f32 %v1083, %v1133
        %v1135 = vpop.f32.mrf.mxu0
        %1136 = vdwg.mxu0
        %s1137 = scalar_lea.vmem %s15, 48
        %v1138 = vld [vmem:[%s1137] sm:$0xf]
        %v1139 = vld [vmem:[%s1137 + $0x4] sm:$0xf]
        %v1140 = vld [vmem:[%s1137 + $0x8] sm:$0xf]
        %v1141 = vld [vmem:[%s1137 + $0xc] sm:$0xf]
        %v1142 = vld [vmem:[%s1137 + $0x10] sm:$0xf]
        %v1143 = vld [vmem:[%s1137 + $0x14] sm:$0xf]
        %v1144 = vld [vmem:[%s1137 + $0x18] sm:$0xf]
        %v1145 = vld [vmem:[%s1137 + $0x1c] sm:$0xf]
        %v1146 = vld [vmem:[%s1137 + $0x20] sm:$0xf]
        %v1147 = vld [vmem:[%s1137 + $0x24] sm:$0xf]
        %v1148 = vld [vmem:[%s1137 + $0x28] sm:$0xf]
        %v1149 = vld [vmem:[%s1137 + $0x2c] sm:$0xf]
        %s1150 = scalar_lea.vmem %s17, 1
        %v1151 = vld [vmem:[%s1150] sm:$0x1]
        %v1153 = vperm.slane %v1151, 0
        %v1167 = vunpack.c.l.b16 %v1138
        %v1168 = vunpack.c.l.b16 %v1139
        %v1169 = vunpack.c.l.b16 %v1140
        %v1170 = vunpack.c.l.b16 %v1141
        %v1171 = vunpack.c.l.b16 %v1142
        %v1172 = vunpack.c.l.b16 %v1143
        %v1173 = vunpack.c.l.b16 %v1144
        %v1174 = vunpack.c.l.b16 %v1145
        %v1175 = vunpack.c.l.b16 %v1146
        %v1176 = vunpack.c.l.b16 %v1147
        %v1177 = vunpack.c.l.b16 %v1148
        %v1178 = vunpack.c.l.b16 %v1149
        %v1179 = vpack.c.b16 %v1168, %v1167
        %v1180 = vpack.c.b16 %v1170, %v1169
        %v1181 = vpack.c.b16 %v1172, %v1171
        %v1182 = vpack.c.b16 %v1174, %v1173
        %v1183 = vpack.c.b16 %v1176, %v1175
        %v1184 = vpack.c.b16 %v1178, %v1177
        %1191 = vmatpush.bf16.msra.mxu0 0
        %1192 = vmatpush.bf16.msra.mxu0 0
        %1193 = vmatpush.bf16.msra.mxu0 %v1184
        %1194 = vmatpush.bf16.msra.mxu0 %v1183
        %1195 = vmatpush.bf16.msra.mxu0 %v1182
        %1196 = vmatpush.bf16.msra.mxu0 %v1181
        %1197 = vmatpush.bf16.msra.mxu0 %v1180
        %1198 = vmatpush.bf16.msra.mxu0 %v1179
        %1199 = vmatmul.bf16.gmra.mxu0 %v1122
        %v1200 = vpop.f32.mrf.mxu0
        %v1201 = vadd.f32 %v1153, %v1200
        %v1202 = vpop.f32.mrf.mxu0
        %1203 = vdwg.mxu0
        %v1204 = vsub.f32 0.0, %v1201
        %v1205 = vmul.f32 %v1204, 1.442695
        %v1206 = vpow.pop %v1205
        %v1207 = vadd.f32 %v1206, 1.0
        %v1208 = vrcp.pop %v1207
        %v1209 = vmul.f32 %v1134, %v1208
        %v1210 = vpack.c.bf16 %v1209, %v1209
        %v1212 = vsel %vm708, %v1210, 0
        %1214 = vmatpush.bf16.msra.mxu0 0
        %1215 = vmatpush.bf16.msra.mxu0 0
        %1216 = vmatpush.bf16.msra.mxu0 0
        %1217 = vmatpush.bf16.msra.mxu0 0
        %1218 = vmatpush.bf16.msra.mxu0 0
        %1219 = vmatpush.bf16.msra.mxu0 0
        %1220 = vmatpush.bf16.msra.mxu0 %v904
        %1221 = vmatpush.bf16.msra.mxu0 %v903
        %1222 = vmatmul.bf16.gmra.mxu0 %v1212
        %v1223 = vpop.f32.mrf.mxu0
        %v1224 = vadd.f32 %v893, %v1223
        %v1225 = vpop.f32.mrf.mxu0
        %1226 = vdwg.mxu0
        %v1227 = vtanh.pop %v1224
        %v1229 = vsel %vm708, %v1227, 0
        %1231 = vmatpush.msra.mxu0 0.0
        %1232 = vmatpush.msra.mxu0 0.0
        %1233 = vmatpush.msra.mxu0 0.0
        %1234 = vmatpush.msra.mxu0 0.0
        %1235 = vmatpush.msra.mxu0 0.0
        %1236 = vmatpush.msra.mxu0 0.0
        %1237 = vmatpush.msra.mxu0 0.0
        %1238 = vmatpush.msra.mxu0 0.0
        %1239 = vmatpush.msra.mxu0 0.0
        %1240 = vmatpush.msra.mxu0 0.0
        %1241 = vmatpush.msra.mxu0 0.0
        %1242 = vmatpush.msra.mxu0 0.0
        %1243 = vmatpush.msra.mxu0 %v669
        %1244 = vmatpush.msra.mxu0 %v668
        %1245 = vmatpush.msra.mxu0 %v667
        %1246 = vmatpush.msra.mxu0 %v666
        %1247 = vmatmul.f32.gmra.mxu0 %v1229
        %v1248 = vpop.f32.mrf.mxu0
        %v1249 = vadd.f32 0.0, %v1248
        %1250 = vdwg.mxu0
        %v1251 = vsel %vm947, %v1249, -inf
        %1252 = vmax.xlane.f32.xlu0 %v1251
        %v1253 = vpop.xlane.xlu0 %1252
        %v1254 = vsub.f32 %v1249, %v1253
        %v1255 = vmul.f32 %v1254, 1.442695
        %v1256 = vpow.pop %v1255
        %v1257 = vsel %vm947, %v1256, 0.0
        %1258 = vadd.xlane.f32.xlu0 %v1257
        %v1259 = vpop.xlane.xlu0 %1258
        %v1260 = vrcp.pop %v1259
        %v1261 = vmul.f32 %v1256, %v1260
        %v1263 = vrot.slane %v1261, 7
        %v1265 = vsel %vm733, 0.0, %v1263
        %v1266 = vadd.f32 %v1261, %v1265
        %1268 = vrot.lane.b32.xlu0 %v1266, 1
        %v1269 = vpop.permute.xlu0 %1268
        %v1271 = vsel %vm968, 0.0, %v1269
        %v1272 = vadd.f32 %v1265, %v1271
        %v1273 = vmul.f32 %v1261, %v1272
        %v1274 = vsel %vm679, %v1273, 0.0
        %v1275 = vsel %vm682, %v1261, %v1274
        %v1276 = vsel %vm947, %v1275, -inf
        %1277 = vmax.xlane.f32.xlu0 %v1276
        %v1278 = vpop.xlane.xlu0 %1277
        %v1279 = vsub.f32 %v1275, %v1278
        %v1280 = vmul.f32 %v1279, 1.442695
        %v1281 = vpow.pop %v1280
        %v1282 = vsel %vm947, %v1281, 0.0
        %1283 = vadd.xlane.f32.xlu0 %v1282
        %v1284 = vpop.xlane.xlu0 %1283
        %v1285 = vrcp.pop %v1284
        %v1286 = vmul.f32 %v1281, %v1285
        %v1288 = vsel %vm947, %v1286, 0
        %1290 = vmatpush.msra.mxu0 0.0
        %1291 = vmatpush.msra.mxu0 0.0
        %1292 = vmatpush.msra.mxu0 0.0
        %1293 = vmatpush.msra.mxu0 0.0
        %1294 = vmatpush.msra.mxu0 0.0
        %1295 = vmatpush.msra.mxu0 0.0
        %1296 = vmatpush.msra.mxu0 0.0
        %1297 = vmatpush.msra.mxu0 0.0
        %1298 = vmatpush.msra.mxu0 0.0
        %1299 = vmatpush.msra.mxu0 0.0
        %1300 = vmatpush.msra.mxu0 0.0
        %1301 = vmatpush.msra.mxu0 0.0
        %1302 = vmatpush.msra.mxu0 0.0
        %1303 = vmatpush.msra.mxu0 0.0
        %1304 = vmatpush.msra.mxu0 0.0
        %1305 = vmatpush.msra.mxu0 %v670
        %1306 = vmatmul.f32.gmra.mxu0 %v1288
        %v1307 = vpop.f32.mrf.mxu0
        %v1308 = vadd.f32 0.0, %v1307
        %1309 = vdwg.mxu0
        %v1310 = vpack.c.bf16 %v1308, %v1308
        %v1312 = vsel %vm708, %v1310, 0
        %1314 = vmatpush.bf16.msra.mxu0 0
        %1315 = vmatpush.bf16.msra.mxu0 0
        %1316 = vmatpush.bf16.msra.mxu0 0
        %1317 = vmatpush.bf16.msra.mxu0 0
        %1318 = vmatpush.bf16.msra.mxu0 0
        %1319 = vmatpush.bf16.msra.mxu0 0
        %1320 = vmatpush.bf16.msra.mxu0 %v1026
        %1321 = vmatpush.bf16.msra.mxu0 %v1025
        %1322 = vmatmul.bf16.gmra.mxu0 %v1312
        %v1323 = vpop.f32.mrf.mxu0
        %v1324 = vadd.f32 %v1015, %v1323
        %v1325 = vpop.f32.mrf.mxu0
        %1326 = vdwg.mxu0
        %v1327 = vtanh.pop %v1324
        %v1328 = vadd.f32 %v1209, %v1327
        %v1329 = vmul.f32 %v1328, 0.70710677
        %v1330 = vadd.f32 %v1329, %v1049
        %v1331 = vmul.f32 %v1330, 0.70710677
        %v1332 = vld [vmem:[%s12] sm:$0xf]
        %v1333 = vld [vmem:[%s12 + $0x4] sm:$0xf]
        %v1334 = vld [vmem:[%s12 + $0x8] sm:$0xf]
        %v1335 = vld [vmem:[%s12 + $0xc] sm:$0xf]
        %v1336 = vpack.c.bf16 %v1331, %v1331
        %v1337 = vld [vmem:[%s13] sm:$0x1]
        %v1339 = vperm.slane %v1337, 0
        %v1345 = vunpack.c.l.b16 %v1332
        %v1346 = vunpack.c.l.b16 %v1333
        %v1347 = vunpack.c.l.b16 %v1334
        %v1348 = vunpack.c.l.b16 %v1335
        %v1349 = vpack.c.b16 %v1346, %v1345
        %v1350 = vpack.c.b16 %v1348, %v1347
        %v1354 = vsel %vm708, %v1336, 0
        %1356 = vmatpush.bf16.msra.mxu0 0
        %1357 = vmatpush.bf16.msra.mxu0 0
        %1358 = vmatpush.bf16.msra.mxu0 0
        %1359 = vmatpush.bf16.msra.mxu0 0
        %1360 = vmatpush.bf16.msra.mxu0 0
        %1361 = vmatpush.bf16.msra.mxu0 0
        %1362 = vmatpush.bf16.msra.mxu0 %v1350
        %1363 = vmatpush.bf16.msra.mxu0 %v1349
        %1364 = vmatmul.bf16.gmra.mxu0 %v1354
        %v1365 = vpop.f32.mrf.mxu0
        %v1366 = vadd.f32 %v1339, %v1365
        %v1367 = vpop.f32.mrf.mxu0
        %1368 = vdwg.mxu0
        %1369 = vmatpush.msra.mxu0 0.0
        %1370 = vmatpush.msra.mxu0 0.0
        %1371 = vmatpush.msra.mxu0 0.0
        %1372 = vmatpush.msra.mxu0 0.0
        %1373 = vmatpush.msra.mxu0 0.0
        %1374 = vmatpush.msra.mxu0 0.0
        %1375 = vmatpush.msra.mxu0 0.0
        %1376 = vmatpush.msra.mxu0 0.0
        %1377 = vmatpush.msra.mxu0 0.0
        %1378 = vmatpush.msra.mxu0 0.0
        %1379 = vmatpush.msra.mxu0 0.0
        %1380 = vmatpush.msra.mxu0 0.0
        %1381 = vmatpush.msra.mxu0 0.0
        %1382 = vmatpush.msra.mxu0 0.0
        %1383 = vmatpush.msra.mxu0 0.0
        %1384 = vmatpush.msra.mxu0 %v664
        %1385 = vmatmul.f32.gmra.mxu0 %v1288
        %v1386 = vpop.f32.mrf.mxu0
        %v1387 = vadd.f32 0.0, %v1386
        %1388 = vdwg.mxu0
        %v1389 = vadd.f32 %v1366, %v1387
        %v1390 = vmul.f32 %v1389, 0.70710677
        %v1391 = vsel %vm708, %v1390, 0.0
        %1392 = vst [vmem:[%s638] sm:$0xff] %v1391
        %v1393 = vsel %vm947, %v1286, 0.0
        %1394 = vst [vmem:[%s645] sm:$0xff] %v1393
        %s1395 = sand.u32 %s443, 1
        %s1396 = scalar_lea.sflag [#allocation3], %s1395
        %s1397 = sand.u32 %s443, 1
        %s1398 = smul.addr %s1397, 8
        %s1399 = scalar_lea.vmem [#allocation2], %s1398
        %s1400 = sand.u32 %s469, 1
        %s1401 = scalar_lea.sflag [#allocation5], %s1400
        %s1402 = sand.u32 %s469, 1
        %s1403 = smul.addr %s1402, 8
        %s1404 = scalar_lea.vmem [#allocation4], %s1403
        // Predicated region
        $region93: #{decoder_forward.1} parent=91 // pred_check
          %p1405 = pneg %p453
        $region94: #{decoder_forward.1} parent=91 // pred_check_branch
          %1407 = sbr.rel (%p1405) target = $region96
        $region95: #{decoder_forward.1} parent=91 // pred_region
          %1409 = vsyncadd %s1396, 0
          %s1410 = smul.addr %s37, 8
          %s1411 = scalar_lea.hbm %s18, %s1410
          %s1413 = sshll.u32 %s1399, 4
          %s1414 = int_to_ptr.vmem [resolvable:$true] %s1413
          %s1415 = sshll.u32 %s1411, 4
          %s1416 = int_to_ptr.hbm [resolvable:$true] %s1415
          %1418 = dma.vmem_to_hbm [thread:$0]  %s1414, 128, %s1416, %s1396
        $region96: #{decoder_forward.1} parent=91 // pred_fallthru
          _
        // Predicated region
        $region97: #{decoder_forward.1} parent=91 // pred_check
          %p1419 = pneg %p479
        $region98: #{decoder_forward.1} parent=91 // pred_check_branch
          %1421 = sbr.rel (%p1419) target = $region100
        $region99: #{decoder_forward.1} parent=91 // pred_region
          %1423 = vsyncadd %s1401, 0
          %s1424 = smul.addr %s37, 8
          %s1425 = scalar_lea.hbm %s19, %s1424
          %s1427 = sshll.u32 %s1404, 4
          %s1428 = int_to_ptr.vmem [resolvable:$true] %s1427
          %s1429 = sshll.u32 %s1425, 4
          %s1430 = int_to_ptr.hbm [resolvable:$true] %s1429
          %1432 = dma.vmem_to_hbm [thread:$0]  %s1428, 128, %s1430, %s1401
        $region100: #{decoder_forward.1} parent=91 // pred_fallthru
          _
      $region92: #{decoder_forward.1} parent=5 // pred_fallthru
        _
      %p1433 = scmp.le.s32.totalorder 2, %s32
      // Predicated region
      $region101: #{decoder_forward.1} parent=5 // pred_check
        %p1434 = pneg %p1433
      $region102: #{decoder_forward.1} parent=5 // pred_check_branch
        %1436 = sbr.rel (%p1434) target = $region104
      $region103: #{decoder_forward.1} parent=5 // pred_region
        %s1437 = ssub.s32 %s32, 2
        // Predicated region
        $region105: #{decoder_forward.1} parent=103 // pred_check
          %p1438 = pneg %p459
        $region106: #{decoder_forward.1} parent=103 // pred_check_branch
          %1440 = sbr.rel (%p1438) target = $region108
        $region107: #{decoder_forward.1} parent=103 // pred_region
          %s1441 = sand.u32 %s444, 1
          %s1442 = scalar_lea.sflag [#allocation3], %s1441
          %s1443 = sand.u32 %s444, 1
          %s1444 = smul.addr %s1443, 8
          %s1445 = scalar_lea.vmem [#allocation2], %s1444
          %1447 = dma.done %s1442, 128
        $region108: #{decoder_forward.1} parent=103 // pred_fallthru
          _
        // Predicated region
        $region109: #{decoder_forward.1} parent=103 // pred_check
          %p1448 = pneg %p485
        $region110: #{decoder_forward.1} parent=103 // pred_check_branch
          %1450 = sbr.rel (%p1448) target = $region112
        $region111: #{decoder_forward.1} parent=103 // pred_region
          %s1451 = sand.u32 %s470, 1
          %s1452 = scalar_lea.sflag [#allocation5], %s1451
          %s1453 = sand.u32 %s470, 1
          %s1454 = smul.addr %s1453, 8
          %s1455 = scalar_lea.vmem [#allocation4], %s1454
          %1457 = dma.done %s1452, 128
        $region112: #{decoder_forward.1} parent=103 // pred_fallthru
          _
      $region104: #{decoder_forward.1} parent=5 // pred_fallthru
        _
    $region6: #{decoder_forward.1} parent=1 // loop_footer
      %s36 = sadd.s32 1, %s32
    $region7: #{decoder_forward.1} parent=1 // loop_footer_branch
      %31 = sbr.rel target = $region3
    $region8: #{decoder_forward.1} parent=1 // loop_exit
      _
    %1458 = vsyncpa [#allocation3], 1
    %s1459 = scalar_lea.sflag [#allocation3], 1
    %1460 = vsyncpa %s1459, 1
    %1461 = vsyncpa [#allocation5], 1
    %s1462 = scalar_lea.sflag [#allocation5], 1
    %1463 = vsyncpa %s1462, 1

</llo_original>
